<compile_context>
chip_gen: v7x
topology: tpu7x:2x2x1
jax: 0.10.0
libtpu: 0.0.40
codegen_flags: <defaults>
</compile_context>

<pallas_src>
import jax
import jax.numpy as jnp
from jax.experimental import pallas as pl
from jax.experimental.pallas import tpu as pltpu

HIDDEN = 100   # logical hidden width of the PyTorch module
HP = 128       # hidden width zero-padded to one full f32 lane tile
W3_ROWS = 8    # final-layer weight padded to a full sublane tile (row 0 is real)


def mlp_kernel(x_ref, w1_ref, b1_ref, w2_ref, b2_ref, w3_ref, b3_ref, o_ref):
    # Transposed layout: x_ref (F, TB); w1 (HP, F); w2 (HP, HP); w3 (W3_ROWS, HP) with
    # only row 0 real; biases are columns (HP, 1) / (1, 1).  Padded hidden rows are
    # exactly zero (zero weights + zero bias -> relu(0) = 0), so results are exact.
    x = x_ref[...]

    # Layer 1: (HP, F) @ (F, TB) + b1, ReLU.
    h1 = jnp.dot(w1_ref[...], x, preferred_element_type=jnp.float32)
    h1 = jnp.maximum(h1 + b1_ref[...], 0.0)

    # Layer 2: (HP, HP) @ (HP, TB) + b2, ReLU.
    h2 = jnp.dot(w2_ref[...], h1, preferred_element_type=jnp.float32)
    h2 = jnp.maximum(h2 + b2_ref[...], 0.0)

    # Layer 3: sublane-aligned (8, HP) @ (HP, TB); real logits are row 0.
    l_full = jnp.dot(w3_ref[...], h2, preferred_element_type=jnp.float32)
    logits = l_full[0:1, :] + b3_ref[...]            # (1, TB), lane-dense
    o_ref[...] = jax.nn.sigmoid(logits)


def _round_up(n, m):
    return ((n + m - 1) // m) * m


def prepare_params(w1, b1, w2, b2, w3, b3):
    """One-time conversion of [in, out]-layout params to the kernel's transposed,
    lane/sublane-padded layout.  Hoisted out of the per-call hot path."""
    F, H = w1.shape
    assert H == HIDDEN and w2.shape == (H, H) and w3.shape == (H, 1)
    w1t = jnp.zeros((HP, F), jnp.float32).at[:H, :].set(w1.T)
    b1c = jnp.zeros((HP, 1), jnp.float32).at[:H, 0].set(jnp.reshape(b1, (H,)))
    w2t = jnp.zeros((HP, HP), jnp.float32).at[:H, :H].set(w2.T)
    b2c = jnp.zeros((HP, 1), jnp.float32).at[:H, 0].set(jnp.reshape(b2, (H,)))
    w3t = jnp.zeros((W3_ROWS, HP), jnp.float32).at[0, :H].set(w3[:, 0])
    b3c = jnp.reshape(b3, (1, 1)).astype(jnp.float32)
    return (w1t, b1c, w2t, b2c, w3t, b3c)


def _specs(F, TB, buffered):
    # Grid-invariant (pinned) weight blocks: index_map is constant, so a single buffer
    # is enough — avoids a pointless second VMEM copy per parameter.
    pin_kwargs = {"pipeline_mode": pl.Buffered(1)} if buffered else {}

    def pinned(shape):
        return pl.BlockSpec(shape, lambda i: (0, 0), **pin_kwargs)

    in_specs = [
        pl.BlockSpec((F, TB), lambda i: (0, i)),      # x^T, streamed over batch lanes
        pinned((HP, F)), pinned((HP, 1)),             # layer 1
        pinned((HP, HP)), pinned((HP, 1)),            # layer 2
        pinned((W3_ROWS, HP)), pinned((1, 1)),        # layer 3
    ]
    out_specs = pl.BlockSpec((1, TB), lambda i: (0, i))
    return in_specs, out_specs


def titanic_mlp(x, params, *, tb=4096):
    """x: (B, F) f32; params from prepare_params(); returns (B, 1) sigmoid outputs."""
    w1t, b1c, w2t, b2c, w3t, b3c = params
    B, F = x.shape
    assert w1t.shape == (HP, F), "params were prepared for a different feature count"

    # --- batch tiling: lane-aligned tiles, whole batch in one grid step when it fits ---
    tb = max(128, _round_up(int(tb), 128))
    Bp0 = _round_up(B, 128)
    n_steps = pl.cdiv(Bp0, tb)
    TB = _round_up(pl.cdiv(Bp0, n_steps), 128)
    Bp = TB * n_steps

    # Per-call work on x only: transpose + zero-pad the batch lanes (one cheap XLA op).
    xt = jnp.zeros((F, Bp), jnp.float32).at[:, :B].set(x.T)

    def run(buffered):
        in_specs, out_specs = _specs(F, TB, buffered)
        return pl.pallas_call(
            mlp_kernel,
            out_shape=jax.ShapeDtypeStruct((1, Bp), jnp.float32),
            grid=(n_steps,),
            in_specs=in_specs,
            out_specs=out_specs,
            compiler_params=pltpu.CompilerParams(
                dimension_semantics=("parallel",)),
        )(xt, w1t, b1c, w2t, b2c, w3t, b3c)

    try:
        out_t = run(buffered=True)       # single-buffered pinned weights
    except Exception:                    # pipeline_mode unsupported -> default buffering
        out_t = run(buffered=False)

    # Lane-packed (1, Bp) sigmoid outputs -> the module's (B, 1) output.
    return out_t[0, :B][:, None]


def init_params(key, in_features, hidden=HIDDEN):
    # Deterministic init mimicking nn.Linear default: U(-1/sqrt(fan_in), 1/sqrt(fan_in))
    ks = jax.random.split(key, 6)

    def layer(kw, kb, fan_in, fan_out):
        bound = 1.0 / jnp.sqrt(fan_in)
        w = jax.random.uniform(kw, (fan_in, fan_out), jnp.float32, -bound, bound)
        b = jax.random.uniform(kb, (1, fan_out), jnp.float32, -bound, bound)
        return w, b

    w1, b1 = layer(ks[0], ks[1], in_features, hidden)
    w2, b2 = layer(ks[2], ks[3], hidden, hidden)
    w3, b3 = layer(ks[4], ks[5], hidden, 1)
    return w1, b1, w2, b2, w3, b3


if __name__ == "__main__":
    key = jax.random.PRNGKey(0)
    k_x, k_p = jax.random.split(key)

    batch = 8
    in_features = 8  # titanic-style tabular feature count (train_x.shape[1])

    x = jax.random.normal(k_x, (batch, in_features), jnp.float32)
    w1, b1, w2, b2, w3, b3 = init_params(k_p, in_features)

    params = prepare_params(w1, b1, w2, b2, w3, b3)   # one-time, outside the hot path
    out = titanic_mlp(x, params)
    out = jax.block_until_ready(out)

    # Reference check in plain JAX with the original (unpadded, untransposed) parameters.
    h1 = jnp.maximum(x @ w1 + b1, 0.0)
    h2 = jnp.maximum(h1 @ w2 + b2, 0.0)
    ref = jax.nn.sigmoid(h2 @ w3 + b3)
    assert out.shape == (batch, 1)
    assert jnp.allclose(out, ref, atol=1e-5), "mismatch vs reference"

    print("KERNEL_OK")
</pallas_src>

<mosaic_0001>
module attributes {stable_mosaic.version = 11 : i64} {
  func.func @mlp_kernel(%arg0: i32, %arg1: memref<8x128xf32, #tpu.memory_space<vmem>>, %arg2: memref<128x8xf32, #tpu.memory_space<vmem>>, %arg3: memref<128x1xf32, #tpu.memory_space<vmem>>, %arg4: memref<128x128xf32, #tpu.memory_space<vmem>>, %arg5: memref<128x1xf32, #tpu.memory_space<vmem>>, %arg6: memref<8x128xf32, #tpu.memory_space<vmem>>, %arg7: memref<1x1xf32, #tpu.memory_space<vmem>>, %arg8: memref<1x128xf32, #tpu.memory_space<vmem>>) attributes {dimension_semantics = [#tpu.dimension_semantics<parallel>], iteration_bounds = array<i64: 1>, scalar_prefetch = 0 : i64, scratch_operands = 0 : i64, tpu.core_type = #tpu.core_type<tc>, window_params = [{transform_indices = @transform_0, window_bounds = array<i64: 8, 128>}, {pipeline_mode = #tpu.pipeline_mode<synchronous>, transform_indices = @transform_1, window_bounds = array<i64: 128, 8>}, {pipeline_mode = #tpu.pipeline_mode<synchronous>, transform_indices = @transform_2, window_bounds = array<i64: 128, 1>}, {pipeline_mode = #tpu.pipeline_mode<synchronous>, transform_indices = @transform_3, window_bounds = array<i64: 128, 128>}, {pipeline_mode = #tpu.pipeline_mode<synchronous>, transform_indices = @transform_4, window_bounds = array<i64: 128, 1>}, {pipeline_mode = #tpu.pipeline_mode<synchronous>, transform_indices = @transform_5, window_bounds = array<i64: 8, 128>}, {pipeline_mode = #tpu.pipeline_mode<synchronous>, transform_indices = @transform_6, window_bounds = array<i64: 1, 1>}, {transform_indices = @transform_7, window_bounds = array<i64: 1, 128>}]} {
    %c0 = arith.constant 0 : index
    %c0_0 = arith.constant 0 : index
    %0 = vector.load %arg1[%c0, %c0_0] : memref<8x128xf32, #tpu.memory_space<vmem>>, vector<8x128xf32>
    %c0_1 = arith.constant 0 : index
    %c0_2 = arith.constant 0 : index
    %1 = vector.load %arg2[%c0_1, %c0_2] : memref<128x8xf32, #tpu.memory_space<vmem>>, vector<128x8xf32>
    %cst = arith.constant dense<0.000000e+00> : vector<128x128xf32>
    %2 = tpu.matmul %1, %0, %cst {dimension_numbers = #tpu.dot_dimension_numbers<[1], [0], [0], [1], [0, 0, 1, 1], [], []>} : vector<128x8xf32>, vector<8x128xf32>, vector<128x128xf32> -> vector<128x128xf32>
    %c0_3 = arith.constant 0 : index
    %c0_4 = arith.constant 0 : index
    %3 = vector.load %arg3[%c0_3, %c0_4] : memref<128x1xf32, #tpu.memory_space<vmem>>, vector<128x1xf32>
    %4 = vector.broadcast %3 : vector<128x1xf32> to vector<128x128xf32>
    %5 = arith.addf %2, %4 : vector<128x128xf32>
    %cst_5 = arith.constant 0.000000e+00 : f32
    %6 = vector.broadcast %cst_5 : f32 to vector<128x128xf32>
    %7 = arith.maximumf %5, %6 : vector<128x128xf32>
    %c0_6 = arith.constant 0 : index
    %c0_7 = arith.constant 0 : index
    %8 = vector.load %arg4[%c0_6, %c0_7] : memref<128x128xf32, #tpu.memory_space<vmem>>, vector<128x128xf32>
    %cst_8 = arith.constant dense<0.000000e+00> : vector<128x128xf32>
    %9 = tpu.matmul %8, %7, %cst_8 {dimension_numbers = #tpu.dot_dimension_numbers<[1], [0], [0], [1], [0, 0, 1, 1], [], []>} : vector<128x128xf32>, vector<128x128xf32>, vector<128x128xf32> -> vector<128x128xf32>
    %c0_9 = arith.constant 0 : index
    %c0_10 = arith.constant 0 : index
    %10 = vector.load %arg5[%c0_9, %c0_10] : memref<128x1xf32, #tpu.memory_space<vmem>>, vector<128x1xf32>
    %11 = vector.broadcast %10 : vector<128x1xf32> to vector<128x128xf32>
    %12 = arith.addf %9, %11 : vector<128x128xf32>
    %cst_11 = arith.constant 0.000000e+00 : f32
    %13 = vector.broadcast %cst_11 : f32 to vector<128x128xf32>
    %14 = arith.maximumf %12, %13 : vector<128x128xf32>
    %c0_12 = arith.constant 0 : index
    %c0_13 = arith.constant 0 : index
    %15 = vector.load %arg6[%c0_12, %c0_13] : memref<8x128xf32, #tpu.memory_space<vmem>>, vector<8x128xf32>
    %cst_14 = arith.constant dense<0.000000e+00> : vector<8x128xf32>
    %16 = tpu.matmul %15, %14, %cst_14 {dimension_numbers = #tpu.dot_dimension_numbers<[1], [0], [0], [1], [0, 0, 1, 1], [], []>} : vector<8x128xf32>, vector<128x128xf32>, vector<8x128xf32> -> vector<8x128xf32>
    %17 = vector.extract_strided_slice %16 {offsets = [0, 0], sizes = [1, 128], strides = [1, 1]} : vector<8x128xf32> to vector<1x128xf32>
    %c0_15 = arith.constant 0 : index
    %c0_16 = arith.constant 0 : index
    %18 = vector.load %arg7[%c0_15, %c0_16] : memref<1x1xf32, #tpu.memory_space<vmem>>, vector<1x1xf32>
    %19 = vector.broadcast %18 : vector<1x1xf32> to vector<1x128xf32>
    %20 = arith.addf %17, %19 : vector<1x128xf32>
    %21 = arith.negf %20 : vector<1x128xf32>
    %22 = math.exp %21 : vector<1x128xf32>
    %cst_17 = arith.constant 1.000000e+00 : f32
    %23 = vector.broadcast %cst_17 : f32 to vector<1x128xf32>
    %24 = arith.addf %23, %22 : vector<1x128xf32>
    %25 = arith.divf %23, %24 : vector<1x128xf32>
    %c0_18 = arith.constant 0 : index
    %c0_19 = arith.constant 0 : index
    %26 = vector.load %arg8[%c0_18, %c0_19] : memref<1x128xf32, #tpu.memory_space<vmem>>, vector<1x128xf32>
    tpu.vector_store %arg8[%c0_18, %c0_19], %25 {strides = array<i32>} : memref<1x128xf32, #tpu.memory_space<vmem>>, vector<1x128xf32>,
    return
  }
  func.func @transform_0(%arg0: i32) -> (i32, i32) {
    %c0_i32 = arith.constant 0 : i32
    %c0_i32_0 = arith.constant 0 : i32
    return %c0_i32, %arg0 : i32, i32
  }
  func.func @transform_1(%arg0: i32) -> (i32, i32) {
    %c0_i32 = arith.constant 0 : i32
    %c0_i32_0 = arith.constant 0 : i32
    %c0_i32_1 = arith.constant 0 : i32
    return %c0_i32, %c0_i32_0 : i32, i32
  }
  func.func @transform_2(%arg0: i32) -> (i32, i32) {
    %c0_i32 = arith.constant 0 : i32
    %c0_i32_0 = arith.constant 0 : i32
    %c0_i32_1 = arith.constant 0 : i32
    return %c0_i32, %c0_i32_0 : i32, i32
  }
  func.func @transform_3(%arg0: i32) -> (i32, i32) {
    %c0_i32 = arith.constant 0 : i32
    %c0_i32_0 = arith.constant 0 : i32
    %c0_i32_1 = arith.constant 0 : i32
    return %c0_i32, %c0_i32_0 : i32, i32
  }
  func.func @transform_4(%arg0: i32) -> (i32, i32) {
    %c0_i32 = arith.constant 0 : i32
    %c0_i32_0 = arith.constant 0 : i32
    %c0_i32_1 = arith.constant 0 : i32
    return %c0_i32, %c0_i32_0 : i32, i32
  }
  func.func @transform_5(%arg0: i32) -> (i32, i32) {
    %c0_i32 = arith.constant 0 : i32
    %c0_i32_0 = arith.constant 0 : i32
    %c0_i32_1 = arith.constant 0 : i32
    return %c0_i32, %c0_i32_0 : i32, i32
  }
  func.func @transform_6(%arg0: i32) -> (i32, i32) {
    %c0_i32 = arith.constant 0 : i32
    %c0_i32_0 = arith.constant 0 : i32
    %c0_i32_1 = arith.constant 0 : i32
    return %c0_i32, %c0_i32_0 : i32, i32
  }
  func.func @transform_7(%arg0: i32) -> (i32, i32) {
    %c0_i32 = arith.constant 0 : i32
    %c0_i32_0 = arith.constant 0 : i32
    return %c0_i32, %arg0 : i32, i32
  }
}

module attributes {stable_mosaic.version = 11 : i64} {
  func.func @mlp_kernel(%arg0: i32, %arg1: memref<8x128xf32, #tpu.memory_space<vmem>>, %arg2: memref<128x8xf32, #tpu.memory_space<vmem>>, %arg3: memref<128x1xf32, #tpu.memory_space<vmem>>, %arg4: memref<128x128xf32, #tpu.memory_space<vmem>>, %arg5: memref<128x1xf32, #tpu.memory_space<vmem>>, %arg6: memref<8x128xf32, #tpu.memory_space<vmem>>, %arg7: memref<1x1xf32, #tpu.memory_space<vmem>>, %arg8: memref<1x128xf32, #tpu.memory_space<vmem>>) attributes {dimension_semantics = [#tpu.dimension_semantics<parallel>], iteration_bounds = array<i64: 1>, scalar_prefetch = 0 : i64, scratch_operands = 0 : i64, tpu.core_type = #tpu.core_type<tc>, window_params = [{transform_indices = @transform_0, window_bounds = array<i64: 8, 128>}, {pipeline_mode = #tpu.pipeline_mode<synchronous>, transform_indices = @transform_1, window_bounds = array<i64: 128, 8>}, {pipeline_mode = #tpu.pipeline_mode<synchronous>, transform_indices = @transform_2, window_bounds = array<i64: 128, 1>}, {pipeline_mode = #tpu.pipeline_mode<synchronous>, transform_indices = @transform_3, window_bounds = array<i64: 128, 128>}, {pipeline_mode = #tpu.pipeline_mode<synchronous>, transform_indices = @transform_4, window_bounds = array<i64: 128, 1>}, {pipeline_mode = #tpu.pipeline_mode<synchronous>, transform_indices = @transform_5, window_bounds = array<i64: 8, 128>}, {pipeline_mode = #tpu.pipeline_mode<synchronous>, transform_indices = @transform_6, window_bounds = array<i64: 1, 1>}, {transform_indices = @transform_7, window_bounds = array<i64: 1, 128>}]} {
    %c0 = arith.constant 0 : index
    %c0_0 = arith.constant 0 : index
    %0 = vector.load %arg1[%c0, %c0_0] : memref<8x128xf32, #tpu.memory_space<vmem>>, vector<8x128xf32>
    %c0_1 = arith.constant 0 : index
    %c0_2 = arith.constant 0 : index
    %1 = vector.load %arg2[%c0_1, %c0_2] : memref<128x8xf32, #tpu.memory_space<vmem>>, vector<128x8xf32>
    %cst = arith.constant dense<0.000000e+00> : vector<128x128xf32>
    %2 = tpu.matmul %1, %0, %cst {dimension_numbers = #tpu.dot_dimension_numbers<[1], [0], [0], [1], [0, 0, 1, 1], [], []>} : vector<128x8xf32>, vector<8x128xf32>, vector<128x128xf32> -> vector<128x128xf32>
    %c0_3 = arith.constant 0 : index
    %c0_4 = arith.constant 0 : index
    %3 = vector.load %arg3[%c0_3, %c0_4] : memref<128x1xf32, #tpu.memory_space<vmem>>, vector<128x1xf32>
    %4 = vector.broadcast %3 : vector<128x1xf32> to vector<128x128xf32>
    %5 = arith.addf %2, %4 : vector<128x128xf32>
    %cst_5 = arith.constant 0.000000e+00 : f32
    %6 = vector.broadcast %cst_5 : f32 to vector<128x128xf32>
    %7 = arith.maximumf %5, %6 : vector<128x128xf32>
    %c0_6 = arith.constant 0 : index
    %c0_7 = arith.constant 0 : index
    %8 = vector.load %arg4[%c0_6, %c0_7] : memref<128x128xf32, #tpu.memory_space<vmem>>, vector<128x128xf32>
    %cst_8 = arith.constant dense<0.000000e+00> : vector<128x128xf32>
    %9 = tpu.matmul %8, %7, %cst_8 {dimension_numbers = #tpu.dot_dimension_numbers<[1], [0], [0], [1], [0, 0, 1, 1], [], []>} : vector<128x128xf32>, vector<128x128xf32>, vector<128x128xf32> -> vector<128x128xf32>
    %c0_9 = arith.constant 0 : index
    %c0_10 = arith.constant 0 : index
    %10 = vector.load %arg5[%c0_9, %c0_10] : memref<128x1xf32, #tpu.memory_space<vmem>>, vector<128x1xf32>
    %11 = vector.broadcast %10 : vector<128x1xf32> to vector<128x128xf32>
    %12 = arith.addf %9, %11 : vector<128x128xf32>
    %cst_11 = arith.constant 0.000000e+00 : f32
    %13 = vector.broadcast %cst_11 : f32 to vector<128x128xf32>
    %14 = arith.maximumf %12, %13 : vector<128x128xf32>
    %c0_12 = arith.constant 0 : index
    %c0_13 = arith.constant 0 : index
    %15 = vector.load %arg6[%c0_12, %c0_13] : memref<8x128xf32, #tpu.memory_space<vmem>>, vector<8x128xf32>
    %cst_14 = arith.constant dense<0.000000e+00> : vector<8x128xf32>
    %16 = tpu.matmul %15, %14, %cst_14 {dimension_numbers = #tpu.dot_dimension_numbers<[1], [0], [0], [1], [0, 0, 1, 1], [], []>} : vector<8x128xf32>, vector<128x128xf32>, vector<8x128xf32> -> vector<8x128xf32>
    %17 = vector.extract_strided_slice %16 {offsets = [0, 0], sizes = [1, 128], strides = [1, 1]} : vector<8x128xf32> to vector<1x128xf32>
    %c0_15 = arith.constant 0 : index
    %c0_16 = arith.constant 0 : index
    %18 = vector.load %arg7[%c0_15, %c0_16] : memref<1x1xf32, #tpu.memory_space<vmem>>, vector<1x1xf32>
    %19 = vector.broadcast %18 : vector<1x1xf32> to vector<1x128xf32>
    %20 = arith.addf %17, %19 : vector<1x128xf32>
    %21 = arith.negf %20 : vector<1x128xf32>
    %22 = math.exp %21 : vector<1x128xf32>
    %cst_17 = arith.constant 1.000000e+00 : f32
    %23 = vector.broadcast %cst_17 : f32 to vector<1x128xf32>
    %24 = arith.addf %23, %22 : vector<1x128xf32>
    %25 = arith.divf %23, %24 : vector<1x128xf32>
    %c0_18 = arith.constant 0 : index
    %c0_19 = arith.constant 0 : index
    %26 = vector.load %arg8[%c0_18, %c0_19] : memref<1x128xf32, #tpu.memory_space<vmem>>, vector<1x128xf32>
    tpu.vector_store %arg8[%c0_18, %c0_19], %25 {strides = array<i32>} : memref<1x128xf32, #tpu.memory_space<vmem>>, vector<1x128xf32>,
    return
  }
  func.func @transform_0(%arg0: i32) -> (i32, i32) {
    %c0_i32 = arith.constant 0 : i32
    %c0_i32_0 = arith.constant 0 : i32
    return %c0_i32, %arg0 : i32, i32
  }
  func.func @transform_1(%arg0: i32) -> (i32, i32) {
    %c0_i32 = arith.constant 0 : i32
    %c0_i32_0 = arith.constant 0 : i32
    %c0_i32_1 = arith.constant 0 : i32
    return %c0_i32, %c0_i32_0 : i32, i32
  }
  func.func @transform_2(%arg0: i32) -> (i32, i32) {
    %c0_i32 = arith.constant 0 : i32
    %c0_i32_0 = arith.constant 0 : i32
    %c0_i32_1 = arith.constant 0 : i32
    return %c0_i32, %c0_i32_0 : i32, i32
  }
  func.func @transform_3(%arg0: i32) -> (i32, i32) {
    %c0_i32 = arith.constant 0 : i32
    %c0_i32_0 = arith.constant 0 : i32
    %c0_i32_1 = arith.constant 0 : i32
    return %c0_i32, %c0_i32_0 : i32, i32
  }
  func.func @transform_4(%arg0: i32) -> (i32, i32) {
    %c0_i32 = arith.constant 0 : i32
    %c0_i32_0 = arith.constant 0 : i32
    %c0_i32_1 = arith.constant 0 : i32
    return %c0_i32, %c0_i32_0 : i32, i32
  }
  func.func @transform_5(%arg0: i32) -> (i32, i32) {
    %c0_i32 = arith.constant 0 : i32
    %c0_i32_0 = arith.constant 0 : i32
    %c0_i32_1 = arith.constant 0 : i32
    return %c0_i32, %c0_i32_0 : i32, i32
  }
  func.func @transform_6(%arg0: i32) -> (i32, i32) {
    %c0_i32 = arith.constant 0 : i32
    %c0_i32_0 = arith.constant 0 : i32
    %c0_i32_1 = arith.constant 0 : i32
    return %c0_i32, %c0_i32_0 : i32, i32
  }
  func.func @transform_7(%arg0: i32) -> (i32, i32) {
    %c0_i32 = arith.constant 0 : i32
    %c0_i32_0 = arith.constant 0 : i32
    return %c0_i32, %arg0 : i32, i32
  }
}

</mosaic_0001>

<llo_original>
// kernel: tpu_custom_call.1
$region0: #{tpu_custom_call.1}
  #allocation0 [shape = 'u32[]', space=smem, size = 0x4, offset = 0x4, fixed_abs, tag = 'smem constant byte address 0x4 - core index']
  #allocation1 [shape = 'u32[144,128]{1,0:T(1,128)}', space=vmem, size = 0x12000, scoped, tag = 'internal scratch']
  #allocation2 [shape = 'f32[1,1]{1,0:T(1,128)S(1)}', space=vmem, size = 0x200, scoped, tag = 'scoped memory for tpu_custom_call.1']
  %s0 = inlined_call_operand.vmem [shape: f32[8,128], index: 0, kind: input, shape index: {}]
  %s1 = inlined_call_operand.vmem [shape: f32[128,8], index: 1, kind: input, shape index: {}]
  %s2 = inlined_call_operand.vmem [shape: f32[128,1], index: 2, kind: input, shape index: {}]
  %s3 = inlined_call_operand.vmem [shape: f32[128,128], index: 3, kind: input, shape index: {}]
  %s4 = inlined_call_operand.vmem [shape: f32[128,1], index: 4, kind: input, shape index: {}]
  %s5 = inlined_call_operand.vmem [shape: f32[8,128], index: 5, kind: input, shape index: {}]
  %s6 = inlined_call_operand.<no memory space> [shape: f32[1,1], index: 6, kind: input, shape index: {}]
  %s7 = inlined_call_operand.hbm [shape: f32[1,128], index: 7, kind: output, shape index: {}]
  %s8 = sld [smem:[#allocation0]]
  $region38: #{tpu_custom_call.1} parent=0
    _
  %s10 = ssub.s32 1, %s8
  %s11 = scalar_select 0, %s10, %s8
  %v12 = vstv %s6
  %13 = vst [vmem:[#allocation2] sm:$0x1] %v12
  $region1: #{tpu_custom_call.1} parent=0
    #allocation3 [shape = 'u8[512]{0}', space=vmem, size = 0x400, scoped, tag = 'output window, operand 0, single buffered']
    #allocation4 [shape = 's32[1]{0}', space=sflag, size = 0x4, scoped, tag = 'scoped memory for tpu_custom_call.1']
    %14 = vsyncpa [#allocation4], 0
    // Predicated region
    $region2: #{tpu_custom_call.1} parent=1 // pred_check
      _
    $region3: #{tpu_custom_call.1} parent=1 // pred_check_branch
      %16 = sbr.rel (0) target = $region5
    $region4: #{tpu_custom_call.1} parent=1 // pred_region
      _
    $region5: #{tpu_custom_call.1} parent=1 // pred_fallthru
      _
    // Predicated region
    $region6: #{tpu_custom_call.1} parent=1 // pred_check
      _
    $region7: #{tpu_custom_call.1} parent=1 // pred_check_branch
      %18 = sbr.rel (0) target = $region9
    $region8: #{tpu_custom_call.1} parent=1 // pred_region
      _
    $region9: #{tpu_custom_call.1} parent=1 // pred_fallthru
      _
    // Predicated region
    $region10: #{tpu_custom_call.1} parent=1 // pred_check
      _
    $region11: #{tpu_custom_call.1} parent=1 // pred_check_branch
      %20 = sbr.rel (0) target = $region13
    $region12: #{tpu_custom_call.1} parent=1 // pred_region
      _
    $region13: #{tpu_custom_call.1} parent=1 // pred_fallthru
      _
    // Predicated region
    $region14: #{tpu_custom_call.1} parent=1 // pred_check
      _
    $region15: #{tpu_custom_call.1} parent=1 // pred_check_branch
      %22 = sbr.rel (0) target = $region17
    $region16: #{tpu_custom_call.1} parent=1 // pred_region
      _
    $region17: #{tpu_custom_call.1} parent=1 // pred_fallthru
      _
    // Predicated region
    $region18: #{tpu_custom_call.1} parent=1 // pred_check
      _
    $region19: #{tpu_custom_call.1} parent=1 // pred_check_branch
      %24 = sbr.rel (0) target = $region21
    $region20: #{tpu_custom_call.1} parent=1 // pred_region
      _
    $region21: #{tpu_custom_call.1} parent=1 // pred_fallthru
      _
    // Predicated region
    $region22: #{tpu_custom_call.1} parent=1 // pred_check
      _
    $region23: #{tpu_custom_call.1} parent=1 // pred_check_branch
      %26 = sbr.rel (0) target = $region25
    $region24: #{tpu_custom_call.1} parent=1 // pred_region
      _
    $region25: #{tpu_custom_call.1} parent=1 // pred_fallthru
      _
    // Predicated region
    $region26: #{tpu_custom_call.1} parent=1 // pred_check
      _
    $region27: #{tpu_custom_call.1} parent=1 // pred_check_branch
      %28 = sbr.rel (0) target = $region29
    $region28: #{tpu_custom_call.1} parent=1 // pred_region
      _
    $region29: #{tpu_custom_call.1} parent=1 // pred_fallthru
      _
    %v29 = vld [vmem:[%s0] sm:$0xff]
    %v30 = vld [vmem:[%s1] sm:$0xff]
    %v31 = vld [vmem:[%s1 + $0x8] sm:$0xff]
    %v32 = vld [vmem:[%s1 + $0x10] sm:$0xff]
    %v33 = vld [vmem:[%s1 + $0x18] sm:$0xff]
    %v34 = vld [vmem:[%s1 + $0x20] sm:$0xff]
    %v35 = vld [vmem:[%s1 + $0x28] sm:$0xff]
    %v36 = vld [vmem:[%s1 + $0x30] sm:$0xff]
    %v37 = vld [vmem:[%s1 + $0x38] sm:$0xff]
    %v38 = vld [vmem:[%s1 + $0x40] sm:$0xff]
    %v39 = vld [vmem:[%s1 + $0x48] sm:$0xff]
    %v40 = vld [vmem:[%s1 + $0x50] sm:$0xff]
    %v41 = vld [vmem:[%s1 + $0x58] sm:$0xff]
    %v42 = vld [vmem:[%s1 + $0x60] sm:$0xff]
    %v43 = vld [vmem:[%s1 + $0x68] sm:$0xff]
    %v44 = vld [vmem:[%s1 + $0x70] sm:$0xff]
    %v45 = vld [vmem:[%s1 + $0x78] sm:$0xff]
    %v46 = vld [vmem:[%s2] sm:$0xff]
    %v47 = vld [vmem:[%s2 + $0x8] sm:$0xff]
    %v48 = vld [vmem:[%s2 + $0x10] sm:$0xff]
    %v49 = vld [vmem:[%s2 + $0x18] sm:$0xff]
    %v50 = vld [vmem:[%s2 + $0x20] sm:$0xff]
    %v51 = vld [vmem:[%s2 + $0x28] sm:$0xff]
    %v52 = vld [vmem:[%s2 + $0x30] sm:$0xff]
    %v53 = vld [vmem:[%s2 + $0x38] sm:$0xff]
    %v54 = vld [vmem:[%s2 + $0x40] sm:$0xff]
    %v55 = vld [vmem:[%s2 + $0x48] sm:$0xff]
    %v56 = vld [vmem:[%s2 + $0x50] sm:$0xff]
    %v57 = vld [vmem:[%s2 + $0x58] sm:$0xff]
    %v58 = vld [vmem:[%s2 + $0x60] sm:$0xff]
    %v59 = vld [vmem:[%s2 + $0x68] sm:$0xff]
    %v60 = vld [vmem:[%s2 + $0x70] sm:$0xff]
    %v61 = vld [vmem:[%s2 + $0x78] sm:$0xff]
    %63 = vset.pattern.permute.xlu0 0
    %64 = vperm.xlu0 %63, %v46
    %v65 = vpop.permute.xlu0 %64
    %68 = vset.pattern.permute.xlu0 0
    %69 = vperm.xlu0 %68, %v47
    %v70 = vpop.permute.xlu0 %69
    %73 = vset.pattern.permute.xlu0 0
    %74 = vperm.xlu0 %73, %v48
    %v75 = vpop.permute.xlu0 %74
    %78 = vset.pattern.permute.xlu0 0
    %79 = vperm.xlu0 %78, %v49
    %v80 = vpop.permute.xlu0 %79
    %83 = vset.pattern.permute.xlu0 0
    %84 = vperm.xlu0 %83, %v50
    %v85 = vpop.permute.xlu0 %84
    %88 = vset.pattern.permute.xlu0 0
    %89 = vperm.xlu0 %88, %v51
    %v90 = vpop.permute.xlu0 %89
    %93 = vset.pattern.permute.xlu0 0
    %94 = vperm.xlu0 %93, %v52
    %v95 = vpop.permute.xlu0 %94
    %98 = vset.pattern.permute.xlu0 0
    %99 = vperm.xlu0 %98, %v53
    %v100 = vpop.permute.xlu0 %99
    %103 = vset.pattern.permute.xlu0 0
    %104 = vperm.xlu0 %103, %v54
    %v105 = vpop.permute.xlu0 %104
    %108 = vset.pattern.permute.xlu0 0
    %109 = vperm.xlu0 %108, %v55
    %v110 = vpop.permute.xlu0 %109
    %113 = vset.pattern.permute.xlu0 0
    %114 = vperm.xlu0 %113, %v56
    %v115 = vpop.permute.xlu0 %114
    %118 = vset.pattern.permute.xlu0 0
    %119 = vperm.xlu0 %118, %v57
    %v120 = vpop.permute.xlu0 %119
    %123 = vset.pattern.permute.xlu0 0
    %124 = vperm.xlu0 %123, %v58
    %v125 = vpop.permute.xlu0 %124
    %128 = vset.pattern.permute.xlu0 0
    %129 = vperm.xlu0 %128, %v59
    %v130 = vpop.permute.xlu0 %129
    %133 = vset.pattern.permute.xlu0 0
    %134 = vperm.xlu0 %133, %v60
    %v135 = vpop.permute.xlu0 %134
    %138 = vset.pattern.permute.xlu0 0
    %139 = vperm.xlu0 %138, %v61
    %v140 = vpop.permute.xlu0 %139
    %vm142 = vcmask 64512
    %v144 = vsel %vm142, %v30, 0
    %v147 = vsel %vm142, %v31, 0
    %v150 = vsel %vm142, %v32, 0
    %v153 = vsel %vm142, %v33, 0
    %v156 = vsel %vm142, %v34, 0
    %v159 = vsel %vm142, %v35, 0
    %v162 = vsel %vm142, %v36, 0
    %v165 = vsel %vm142, %v37, 0
    %v168 = vsel %vm142, %v38, 0
    %v171 = vsel %vm142, %v39, 0
    %v174 = vsel %vm142, %v40, 0
    %v177 = vsel %vm142, %v41, 0
    %v180 = vsel %vm142, %v42, 0
    %v183 = vsel %vm142, %v43, 0
    %v186 = vsel %vm142, %v44, 0
    %v189 = vsel %vm142, %v45, 0
    %191 = vmatprep.subr.mxu0 0.0
    %192 = vmatpush1.msra.mxu0 %v29
    %193 = vmatprep.subr.mxu0 0.0
    %194 = vmatpush1.msra.mxu0 0.0
    %195 = vmatprep.subr.mxu0 0.0
    %196 = vmatpush1.msra.mxu0 0.0
    %197 = vmatprep.subr.mxu0 0.0
    %198 = vmatpush1.msra.mxu0 0.0
    %199 = vmatprep.subr.mxu0 0.0
    %200 = vmatpush1.msra.mxu0 0.0
    %201 = vmatprep.subr.mxu0 0.0
    %202 = vmatpush1.msra.mxu0 0.0
    %203 = vmatprep.subr.mxu0 0.0
    %204 = vmatpush1.msra.mxu0 0.0
    %205 = vmatprep.subr.mxu0 0.0
    %206 = vmatpush1.msra.mxu0 0.0
    %207 = vmatprep.subr.mxu0 0.0
    %208 = vmatpush1.msra.mxu0 0.0
    %209 = vmatprep.subr.mxu0 0.0
    %210 = vmatpush1.msra.mxu0 0.0
    %211 = vmatprep.subr.mxu0 0.0
    %212 = vmatpush1.msra.mxu0 0.0
    %213 = vmatprep.subr.mxu0 0.0
    %214 = vmatpush1.msra.mxu0 0.0
    %215 = vmatprep.subr.mxu0 0.0
    %216 = vmatpush1.msra.mxu0 0.0
    %217 = vmatprep.subr.mxu0 0.0
    %218 = vmatpush1.msra.mxu0 0.0
    %219 = vmatprep.subr.mxu0 0.0
    %220 = vmatpush1.msra.mxu0 0.0
    %221 = vmatprep.subr.mxu0 0.0
    %222 = vmatpush1.msra.mxu0 0.0
    %223 = vmatprep.subr.mxu0 0.0
    %224 = vmatpush1.msra.mxu0 0.0
    %225 = vmatprep.subr.mxu0 0.0
    %226 = vmatpush1.msra.mxu0 0.0
    %227 = vmatprep.subr.mxu0 0.0
    %228 = vmatpush1.msra.mxu0 0.0
    %229 = vmatprep.subr.mxu0 0.0
    %230 = vmatpush1.msra.mxu0 0.0
    %231 = vmatprep.subr.mxu0 0.0
    %232 = vmatpush1.msra.mxu0 0.0
    %233 = vmatprep.subr.mxu0 0.0
    %234 = vmatpush1.msra.mxu0 0.0
    %235 = vmatprep.subr.mxu0 0.0
    %236 = vmatpush1.msra.mxu0 0.0
    %237 = vmatprep.subr.mxu0 0.0
    %238 = vmatpush1.msra.mxu0 0.0
    %239 = vmatprep.subr.mxu0 0.0
    %240 = vmatpush1.msra.mxu0 0.0
    %241 = vmatprep.subr.mxu0 0.0
    %242 = vmatpush1.msra.mxu0 0.0
    %243 = vmatprep.subr.mxu0 0.0
    %244 = vmatpush1.msra.mxu0 0.0
    %245 = vmatprep.subr.mxu0 0.0
    %246 = vmatpush1.msra.mxu0 0.0
    %247 = vmatprep.subr.mxu0 0.0
    %248 = vmatpush1.msra.mxu0 0.0
    %249 = vmatprep.subr.mxu0 0.0
    %250 = vmatpush1.msra.mxu0 0.0
    %251 = vmatprep.subr.mxu0 0.0
    %252 = vmatpush1.msra.mxu0 0.0
    %253 = vmatprep.subr.mxu0 0.0
    %254 = vmatpush1.msra.mxu0 0.0
    %255 = vmatprep.mubr.f32.mxu0 0.0
    %256 = vmatmul.mubr.f32.gmra.mrb[0].mxu0 %v144
    %v257 = vpop.f32.mrb[0].mxu0
    %v258 = vadd.f32 %v65, %v257
    %v259 = vpop.f32.mrb[0].mxu0
    %260 = vmatprep.mubr.f32.mxu0 0.0
    %261 = vmatmul.mubr.f32.gmra.mrb[0].mxu0 %v147
    %v262 = vpop.f32.mrb[0].mxu0
    %v263 = vadd.f32 %v70, %v262
    %v264 = vpop.f32.mrb[0].mxu0
    %265 = vmatprep.mubr.f32.mxu0 0.0
    %266 = vmatmul.mubr.f32.gmra.mrb[0].mxu0 %v150
    %v267 = vpop.f32.mrb[0].mxu0
    %v268 = vadd.f32 %v75, %v267
    %v269 = vpop.f32.mrb[0].mxu0
    %270 = vmatprep.mubr.f32.mxu0 0.0
    %271 = vmatmul.mubr.f32.gmra.mrb[0].mxu0 %v153
    %v272 = vpop.f32.mrb[0].mxu0
    %v273 = vadd.f32 %v80, %v272
    %v274 = vpop.f32.mrb[0].mxu0
    %275 = vmatprep.mubr.f32.mxu0 0.0
    %276 = vmatmul.mubr.f32.gmra.mrb[0].mxu0 %v156
    %v277 = vpop.f32.mrb[0].mxu0
    %v278 = vadd.f32 %v85, %v277
    %v279 = vpop.f32.mrb[0].mxu0
    %280 = vmatprep.mubr.f32.mxu0 0.0
    %281 = vmatmul.mubr.f32.gmra.mrb[0].mxu0 %v159
    %v282 = vpop.f32.mrb[0].mxu0
    %v283 = vadd.f32 %v90, %v282
    %v284 = vpop.f32.mrb[0].mxu0
    %285 = vmatprep.mubr.f32.mxu0 0.0
    %286 = vmatmul.mubr.f32.gmra.mrb[0].mxu0 %v162
    %v287 = vpop.f32.mrb[0].mxu0
    %v288 = vadd.f32 %v95, %v287
    %v289 = vpop.f32.mrb[0].mxu0
    %290 = vmatprep.mubr.f32.mxu0 0.0
    %291 = vmatmul.mubr.f32.gmra.mrb[0].mxu0 %v165
    %v292 = vpop.f32.mrb[0].mxu0
    %v293 = vadd.f32 %v100, %v292
    %v294 = vpop.f32.mrb[0].mxu0
    %295 = vmatprep.mubr.f32.mxu0 0.0
    %296 = vmatmul.mubr.f32.gmra.mrb[0].mxu0 %v168
    %v297 = vpop.f32.mrb[0].mxu0
    %v298 = vadd.f32 %v105, %v297
    %v299 = vpop.f32.mrb[0].mxu0
    %300 = vmatprep.mubr.f32.mxu0 0.0
    %301 = vmatmul.mubr.f32.gmra.mrb[0].mxu0 %v171
    %v302 = vpop.f32.mrb[0].mxu0
    %v303 = vadd.f32 %v110, %v302
    %v304 = vpop.f32.mrb[0].mxu0
    %305 = vmatprep.mubr.f32.mxu0 0.0
    %306 = vmatmul.mubr.f32.gmra.mrb[0].mxu0 %v174
    %v307 = vpop.f32.mrb[0].mxu0
    %v308 = vadd.f32 %v115, %v307
    %v309 = vpop.f32.mrb[0].mxu0
    %310 = vmatprep.mubr.f32.mxu0 0.0
    %311 = vmatmul.mubr.f32.gmra.mrb[0].mxu0 %v177
    %v312 = vpop.f32.mrb[0].mxu0
    %v313 = vadd.f32 %v120, %v312
    %v314 = vpop.f32.mrb[0].mxu0
    %315 = vmatprep.mubr.f32.mxu0 0.0
    %316 = vmatmul.mubr.f32.gmra.mrb[0].mxu0 %v180
    %v317 = vpop.f32.mrb[0].mxu0
    %v318 = vadd.f32 %v125, %v317
    %v319 = vpop.f32.mrb[0].mxu0
    %320 = vmatprep.mubr.f32.mxu0 0.0
    %321 = vmatmul.mubr.f32.gmra.mrb[0].mxu0 %v183
    %v322 = vpop.f32.mrb[0].mxu0
    %v323 = vadd.f32 %v130, %v322
    %v324 = vpop.f32.mrb[0].mxu0
    %325 = vmatprep.mubr.f32.mxu0 0.0
    %326 = vmatmul.mubr.f32.gmra.mrb[0].mxu0 %v186
    %v327 = vpop.f32.mrb[0].mxu0
    %v328 = vadd.f32 %v135, %v327
    %v329 = vpop.f32.mrb[0].mxu0
    %330 = vmatprep.mubr.f32.mxu0 0.0
    %331 = vmatmul.mubr.f32.gmra.mrb[0].mxu0 %v189
    %v332 = vpop.f32.mrb[0].mxu0
    %v333 = vadd.f32 %v140, %v332
    %v334 = vpop.f32.mrb[0].mxu0
    %335 = vdwg.mxu0
    %v336 = vmax.f32 %v258, 0.0
    %v337 = vmax.f32 %v263, 0.0
    %v338 = vmax.f32 %v268, 0.0
    %v339 = vmax.f32 %v273, 0.0
    %v340 = vmax.f32 %v278, 0.0
    %v341 = vmax.f32 %v283, 0.0
    %v342 = vmax.f32 %v288, 0.0
    %v343 = vmax.f32 %v293, 0.0
    %v344 = vmax.f32 %v298, 0.0
    %v345 = vmax.f32 %v303, 0.0
    %v346 = vmax.f32 %v308, 0.0
    %v347 = vmax.f32 %v313, 0.0
    %v348 = vmax.f32 %v318, 0.0
    %v349 = vmax.f32 %v323, 0.0
    %v350 = vmax.f32 %v328, 0.0
    %v351 = vmax.f32 %v333, 0.0
    %v352 = vld [vmem:[%s3] sm:$0xff]
    %v353 = vld [vmem:[%s3 + $0x8] sm:$0xff]
    %v354 = vld [vmem:[%s3 + $0x10] sm:$0xff]
    %v355 = vld [vmem:[%s3 + $0x18] sm:$0xff]
    %v356 = vld [vmem:[%s3 + $0x20] sm:$0xff]
    %v357 = vld [vmem:[%s3 + $0x28] sm:$0xff]
    %v358 = vld [vmem:[%s3 + $0x30] sm:$0xff]
    %v359 = vld [vmem:[%s3 + $0x38] sm:$0xff]
    %v360 = vld [vmem:[%s3 + $0x40] sm:$0xff]
    %v361 = vld [vmem:[%s3 + $0x48] sm:$0xff]
    %v362 = vld [vmem:[%s3 + $0x50] sm:$0xff]
    %v363 = vld [vmem:[%s3 + $0x58] sm:$0xff]
    %v364 = vld [vmem:[%s3 + $0x60] sm:$0xff]
    %v365 = vld [vmem:[%s3 + $0x68] sm:$0xff]
    %v366 = vld [vmem:[%s3 + $0x70] sm:$0xff]
    %v367 = vld [vmem:[%s3 + $0x78] sm:$0xff]
    %v368 = vld [vmem:[%s4] sm:$0xff]
    %v369 = vld [vmem:[%s4 + $0x8] sm:$0xff]
    %v370 = vld [vmem:[%s4 + $0x10] sm:$0xff]
    %v371 = vld [vmem:[%s4 + $0x18] sm:$0xff]
    %v372 = vld [vmem:[%s4 + $0x20] sm:$0xff]
    %v373 = vld [vmem:[%s4 + $0x28] sm:$0xff]
    %v374 = vld [vmem:[%s4 + $0x30] sm:$0xff]
    %v375 = vld [vmem:[%s4 + $0x38] sm:$0xff]
    %v376 = vld [vmem:[%s4 + $0x40] sm:$0xff]
    %v377 = vld [vmem:[%s4 + $0x48] sm:$0xff]
    %v378 = vld [vmem:[%s4 + $0x50] sm:$0xff]
    %v379 = vld [vmem:[%s4 + $0x58] sm:$0xff]
    %v380 = vld [vmem:[%s4 + $0x60] sm:$0xff]
    %v381 = vld [vmem:[%s4 + $0x68] sm:$0xff]
    %v382 = vld [vmem:[%s4 + $0x70] sm:$0xff]
    %v383 = vld [vmem:[%s4 + $0x78] sm:$0xff]
    %385 = vset.pattern.permute.xlu0 0
    %386 = vperm.xlu0 %385, %v368
    %v387 = vpop.permute.xlu0 %386
    %390 = vset.pattern.permute.xlu0 0
    %391 = vperm.xlu0 %390, %v369
    %v392 = vpop.permute.xlu0 %391
    %395 = vset.pattern.permute.xlu0 0
    %396 = vperm.xlu0 %395, %v370
    %v397 = vpop.permute.xlu0 %396
    %400 = vset.pattern.permute.xlu0 0
    %401 = vperm.xlu0 %400, %v371
    %v402 = vpop.permute.xlu0 %401
    %405 = vset.pattern.permute.xlu0 0
    %406 = vperm.xlu0 %405, %v372
    %v407 = vpop.permute.xlu0 %406
    %410 = vset.pattern.permute.xlu0 0
    %411 = vperm.xlu0 %410, %v373
    %v412 = vpop.permute.xlu0 %411
    %415 = vset.pattern.permute.xlu0 0
    %416 = vperm.xlu0 %415, %v374
    %v417 = vpop.permute.xlu0 %416
    %420 = vset.pattern.permute.xlu0 0
    %421 = vperm.xlu0 %420, %v375
    %v422 = vpop.permute.xlu0 %421
    %425 = vset.pattern.permute.xlu0 0
    %426 = vperm.xlu0 %425, %v376
    %v427 = vpop.permute.xlu0 %426
    %430 = vset.pattern.permute.xlu0 0
    %431 = vperm.xlu0 %430, %v377
    %v432 = vpop.permute.xlu0 %431
    %435 = vset.pattern.permute.xlu0 0
    %436 = vperm.xlu0 %435, %v378
    %v437 = vpop.permute.xlu0 %436
    %440 = vset.pattern.permute.xlu0 0
    %441 = vperm.xlu0 %440, %v379
    %v442 = vpop.permute.xlu0 %441
    %445 = vset.pattern.permute.xlu0 0
    %446 = vperm.xlu0 %445, %v380
    %v447 = vpop.permute.xlu0 %446
    %450 = vset.pattern.permute.xlu0 0
    %451 = vperm.xlu0 %450, %v381
    %v452 = vpop.permute.xlu0 %451
    %455 = vset.pattern.permute.xlu0 0
    %456 = vperm.xlu0 %455, %v382
    %v457 = vpop.permute.xlu0 %456
    %460 = vset.pattern.permute.xlu0 0
    %461 = vperm.xlu0 %460, %v383
    %v462 = vpop.permute.xlu0 %461
    %464 = vmatprep.subr.mxu0 0.0
    %465 = vmatpush1.msra.mxu0 %v336
    %466 = vmatprep.subr.mxu0 0.0
    %467 = vmatpush1.msra.mxu0 %v337
    %468 = vmatprep.subr.mxu0 0.0
    %469 = vmatpush1.msra.mxu0 %v338
    %470 = vmatprep.subr.mxu0 0.0
    %471 = vmatpush1.msra.mxu0 %v339
    %472 = vmatprep.subr.mxu0 0.0
    %473 = vmatpush1.msra.mxu0 %v340
    %474 = vmatprep.subr.mxu0 0.0
    %475 = vmatpush1.msra.mxu0 %v341
    %476 = vmatprep.subr.mxu0 0.0
    %477 = vmatpush1.msra.mxu0 %v342
    %478 = vmatprep.subr.mxu0 0.0
    %479 = vmatpush1.msra.mxu0 %v343
    %480 = vmatprep.subr.mxu0 0.0
    %481 = vmatpush1.msra.mxu0 %v344
    %482 = vmatprep.subr.mxu0 0.0
    %483 = vmatpush1.msra.mxu0 %v345
    %484 = vmatprep.subr.mxu0 0.0
    %485 = vmatpush1.msra.mxu0 %v346
    %486 = vmatprep.subr.mxu0 0.0
    %487 = vmatpush1.msra.mxu0 %v347
    %488 = vmatprep.subr.mxu0 0.0
    %489 = vmatpush1.msra.mxu0 %v348
    %490 = vmatprep.subr.mxu0 0.0
    %491 = vmatpush1.msra.mxu0 %v349
    %492 = vmatprep.subr.mxu0 0.0
    %493 = vmatpush1.msra.mxu0 %v350
    %494 = vmatprep.subr.mxu0 0.0
    %495 = vmatpush1.msra.mxu0 %v351
    %496 = vmatprep.subr.mxu0 0.0
    %497 = vmatpush1.msra.mxu0 0.0
    %498 = vmatprep.subr.mxu0 0.0
    %499 = vmatpush1.msra.mxu0 0.0
    %500 = vmatprep.subr.mxu0 0.0
    %501 = vmatpush1.msra.mxu0 0.0
    %502 = vmatprep.subr.mxu0 0.0
    %503 = vmatpush1.msra.mxu0 0.0
    %504 = vmatprep.subr.mxu0 0.0
    %505 = vmatpush1.msra.mxu0 0.0
    %506 = vmatprep.subr.mxu0 0.0
    %507 = vmatpush1.msra.mxu0 0.0
    %508 = vmatprep.subr.mxu0 0.0
    %509 = vmatpush1.msra.mxu0 0.0
    %510 = vmatprep.subr.mxu0 0.0
    %511 = vmatpush1.msra.mxu0 0.0
    %512 = vmatprep.subr.mxu0 0.0
    %513 = vmatpush1.msra.mxu0 0.0
    %514 = vmatprep.subr.mxu0 0.0
    %515 = vmatpush1.msra.mxu0 0.0
    %516 = vmatprep.subr.mxu0 0.0
    %517 = vmatpush1.msra.mxu0 0.0
    %518 = vmatprep.subr.mxu0 0.0
    %519 = vmatpush1.msra.mxu0 0.0
    %520 = vmatprep.subr.mxu0 0.0
    %521 = vmatpush1.msra.mxu0 0.0
    %522 = vmatprep.subr.mxu0 0.0
    %523 = vmatpush1.msra.mxu0 0.0
    %524 = vmatprep.subr.mxu0 0.0
    %525 = vmatpush1.msra.mxu0 0.0
    %526 = vmatprep.subr.mxu0 0.0
    %527 = vmatpush1.msra.mxu0 0.0
    %528 = vmatprep.mubr.f32.mxu0 0.0
    %529 = vmatmul.mubr.f32.gmra.mrb[0].mxu0 %v352
    %v530 = vpop.f32.mrb[0].mxu0
    %v531 = vadd.f32 %v387, %v530
    %v532 = vpop.f32.mrb[0].mxu0
    %533 = vmatprep.mubr.f32.mxu0 0.0
    %534 = vmatmul.mubr.f32.gmra.mrb[0].mxu0 %v353
    %v535 = vpop.f32.mrb[0].mxu0
    %v536 = vadd.f32 %v392, %v535
    %v537 = vpop.f32.mrb[0].mxu0
    %538 = vmatprep.mubr.f32.mxu0 0.0
    %539 = vmatmul.mubr.f32.gmra.mrb[0].mxu0 %v354
    %v540 = vpop.f32.mrb[0].mxu0
    %v541 = vadd.f32 %v397, %v540
    %v542 = vpop.f32.mrb[0].mxu0
    %543 = vmatprep.mubr.f32.mxu0 0.0
    %544 = vmatmul.mubr.f32.gmra.mrb[0].mxu0 %v355
    %v545 = vpop.f32.mrb[0].mxu0
    %v546 = vadd.f32 %v402, %v545
    %v547 = vpop.f32.mrb[0].mxu0
    %548 = vmatprep.mubr.f32.mxu0 0.0
    %549 = vmatmul.mubr.f32.gmra.mrb[0].mxu0 %v356
    %v550 = vpop.f32.mrb[0].mxu0
    %v551 = vadd.f32 %v407, %v550
    %v552 = vpop.f32.mrb[0].mxu0
    %553 = vmatprep.mubr.f32.mxu0 0.0
    %554 = vmatmul.mubr.f32.gmra.mrb[0].mxu0 %v357
    %v555 = vpop.f32.mrb[0].mxu0
    %v556 = vadd.f32 %v412, %v555
    %v557 = vpop.f32.mrb[0].mxu0
    %558 = vmatprep.mubr.f32.mxu0 0.0
    %559 = vmatmul.mubr.f32.gmra.mrb[0].mxu0 %v358
    %v560 = vpop.f32.mrb[0].mxu0
    %v561 = vadd.f32 %v417, %v560
    %v562 = vpop.f32.mrb[0].mxu0
    %563 = vmatprep.mubr.f32.mxu0 0.0
    %564 = vmatmul.mubr.f32.gmra.mrb[0].mxu0 %v359
    %v565 = vpop.f32.mrb[0].mxu0
    %v566 = vadd.f32 %v422, %v565
    %v567 = vpop.f32.mrb[0].mxu0
    %568 = vmatprep.mubr.f32.mxu0 0.0
    %569 = vmatmul.mubr.f32.gmra.mrb[0].mxu0 %v360
    %v570 = vpop.f32.mrb[0].mxu0
    %v571 = vadd.f32 %v427, %v570
    %v572 = vpop.f32.mrb[0].mxu0
    %573 = vmatprep.mubr.f32.mxu0 0.0
    %574 = vmatmul.mubr.f32.gmra.mrb[0].mxu0 %v361
    %v575 = vpop.f32.mrb[0].mxu0
    %v576 = vadd.f32 %v432, %v575
    %v577 = vpop.f32.mrb[0].mxu0
    %578 = vmatprep.mubr.f32.mxu0 0.0
    %579 = vmatmul.mubr.f32.gmra.mrb[0].mxu0 %v362
    %v580 = vpop.f32.mrb[0].mxu0
    %v581 = vadd.f32 %v437, %v580
    %v582 = vpop.f32.mrb[0].mxu0
    %583 = vmatprep.mubr.f32.mxu0 0.0
    %584 = vmatmul.mubr.f32.gmra.mrb[0].mxu0 %v363
    %v585 = vpop.f32.mrb[0].mxu0
    %v586 = vadd.f32 %v442, %v585
    %v587 = vpop.f32.mrb[0].mxu0
    %588 = vmatprep.mubr.f32.mxu0 0.0
    %589 = vmatmul.mubr.f32.gmra.mrb[0].mxu0 %v364
    %v590 = vpop.f32.mrb[0].mxu0
    %v591 = vadd.f32 %v447, %v590
    %v592 = vpop.f32.mrb[0].mxu0
    %593 = vmatprep.mubr.f32.mxu0 0.0
    %594 = vmatmul.mubr.f32.gmra.mrb[0].mxu0 %v365
    %v595 = vpop.f32.mrb[0].mxu0
    %v596 = vadd.f32 %v452, %v595
    %v597 = vpop.f32.mrb[0].mxu0
    %598 = vmatprep.mubr.f32.mxu0 0.0
    %599 = vmatmul.mubr.f32.gmra.mrb[0].mxu0 %v366
    %v600 = vpop.f32.mrb[0].mxu0
    %v601 = vadd.f32 %v457, %v600
    %v602 = vpop.f32.mrb[0].mxu0
    %603 = vmatprep.mubr.f32.mxu0 0.0
    %604 = vmatmul.mubr.f32.gmra.mrb[0].mxu0 %v367
    %v605 = vpop.f32.mrb[0].mxu0
    %v606 = vadd.f32 %v462, %v605
    %v607 = vpop.f32.mrb[0].mxu0
    %608 = vdwg.mxu0
    %v609 = vmax.f32 %v531, 0.0
    %v610 = vmax.f32 %v536, 0.0
    %v611 = vmax.f32 %v541, 0.0
    %v612 = vmax.f32 %v546, 0.0
    %v613 = vmax.f32 %v551, 0.0
    %v614 = vmax.f32 %v556, 0.0
    %v615 = vmax.f32 %v561, 0.0
    %v616 = vmax.f32 %v566, 0.0
    %v617 = vmax.f32 %v571, 0.0
    %v618 = vmax.f32 %v576, 0.0
    %v619 = vmax.f32 %v581, 0.0
    %v620 = vmax.f32 %v586, 0.0
    %v621 = vmax.f32 %v591, 0.0
    %v622 = vmax.f32 %v596, 0.0
    %v623 = vmax.f32 %v601, 0.0
    %v624 = vmax.f32 %v606, 0.0
    %v625 = vld [vmem:[%s5] sm:$0xff]
    %626 = vmatprep.subr.mxu0 0.0
    %627 = vmatpush1.msra.mxu0 %v609
    %628 = vmatprep.subr.mxu0 0.0
    %629 = vmatpush1.msra.mxu0 %v610
    %630 = vmatprep.subr.mxu0 0.0
    %631 = vmatpush1.msra.mxu0 %v611
    %632 = vmatprep.subr.mxu0 0.0
    %633 = vmatpush1.msra.mxu0 %v612
    %634 = vmatprep.subr.mxu0 0.0
    %635 = vmatpush1.msra.mxu0 %v613
    %636 = vmatprep.subr.mxu0 0.0
    %637 = vmatpush1.msra.mxu0 %v614
    %638 = vmatprep.subr.mxu0 0.0
    %639 = vmatpush1.msra.mxu0 %v615
    %640 = vmatprep.subr.mxu0 0.0
    %641 = vmatpush1.msra.mxu0 %v616
    %642 = vmatprep.subr.mxu0 0.0
    %643 = vmatpush1.msra.mxu0 %v617
    %644 = vmatprep.subr.mxu0 0.0
    %645 = vmatpush1.msra.mxu0 %v618
    %646 = vmatprep.subr.mxu0 0.0
    %647 = vmatpush1.msra.mxu0 %v619
    %648 = vmatprep.subr.mxu0 0.0
    %649 = vmatpush1.msra.mxu0 %v620
    %650 = vmatprep.subr.mxu0 0.0
    %651 = vmatpush1.msra.mxu0 %v621
    %652 = vmatprep.subr.mxu0 0.0
    %653 = vmatpush1.msra.mxu0 %v622
    %654 = vmatprep.subr.mxu0 0.0
    %655 = vmatpush1.msra.mxu0 %v623
    %656 = vmatprep.subr.mxu0 0.0
    %657 = vmatpush1.msra.mxu0 %v624
    %658 = vmatprep.subr.mxu0 0.0
    %659 = vmatpush1.msra.mxu0 0.0
    %660 = vmatprep.subr.mxu0 0.0
    %661 = vmatpush1.msra.mxu0 0.0
    %662 = vmatprep.subr.mxu0 0.0
    %663 = vmatpush1.msra.mxu0 0.0
    %664 = vmatprep.subr.mxu0 0.0
    %665 = vmatpush1.msra.mxu0 0.0
    %666 = vmatprep.subr.mxu0 0.0
    %667 = vmatpush1.msra.mxu0 0.0
    %668 = vmatprep.subr.mxu0 0.0
    %669 = vmatpush1.msra.mxu0 0.0
    %670 = vmatprep.subr.mxu0 0.0
    %671 = vmatpush1.msra.mxu0 0.0
    %672 = vmatprep.subr.mxu0 0.0
    %673 = vmatpush1.msra.mxu0 0.0
    %674 = vmatprep.subr.mxu0 0.0
    %675 = vmatpush1.msra.mxu0 0.0
    %676 = vmatprep.subr.mxu0 0.0
    %677 = vmatpush1.msra.mxu0 0.0
    %678 = vmatprep.subr.mxu0 0.0
    %679 = vmatpush1.msra.mxu0 0.0
    %680 = vmatprep.subr.mxu0 0.0
    %681 = vmatpush1.msra.mxu0 0.0
    %682 = vmatprep.subr.mxu0 0.0
    %683 = vmatpush1.msra.mxu0 0.0
    %684 = vmatprep.subr.mxu0 0.0
    %685 = vmatpush1.msra.mxu0 0.0
    %686 = vmatprep.subr.mxu0 0.0
    %687 = vmatpush1.msra.mxu0 0.0
    %688 = vmatprep.subr.mxu0 0.0
    %689 = vmatpush1.msra.mxu0 0.0
    %690 = vmatprep.mubr.f32.mxu0 0.0
    %691 = vmatmul.mubr.f32.gmra.mrb[0].mxu0 %v625
    %v692 = vpop.f32.mrb[0].mxu0
    %v693 = vadd.f32 0.0, %v692
    %v694 = vpop.f32.mrb[0].mxu0
    %695 = vdwg.mxu0
    %v696 = vld [vmem:[#allocation2] sm:$0x1]
    %698 = vset.pattern.permute.xlu0 0
    %699 = vperm.xlu0 %698, %v696
    %v700 = vpop.permute.xlu0 %699
    %v702 = vlaneseq
    %v703 = vshrl.u32 %v702, 7
    %v704 = vsub.s32 0, %v703
    %v705 = vrot.slane %v700, %v704
    %v706 = vadd.f32 %v693, %v705
    %v707 = vxor.u32 %v706, 2147483648
    %v708 = vmul.f32 %v707, 1.442695
    %v709 = vpow.pop %v708
    %v710 = vadd.f32 %v709, 1.0
    %v711 = vrcp.pop %v710
    %v712 = vmul.f32 1.0, %v711
    %713 = vst [vmem:[#allocation3] sm:$0x1] %v712
    // Predicated region
    $region30: #{tpu_custom_call.1} parent=1 // pred_check
      _
    $region31: #{tpu_custom_call.1} parent=1 // pred_check_branch
      %715 = sbr.rel (0) target = $region33
    $region32: #{tpu_custom_call.1} parent=1 // pred_region
      %s717 = ssub.s32 16, 16
      %718 = vsyncadd [#allocation4], %s717
      %s720 = sshll.u32 [#allocation3], 4
      %s721 = int_to_ptr.vmem [resolvable:$true] %s720
      %723 = dma.vmem_to_hbm [thread:$0]  %s721, 16, %s7, [#allocation4]
    $region33: #{tpu_custom_call.1} parent=1 // pred_fallthru
      _
    // Predicated region
    $region34: #{tpu_custom_call.1} parent=1 // pred_check
      _
    $region35: #{tpu_custom_call.1} parent=1 // pred_check_branch
      %725 = sbr.rel (0) target = $region37
    $region36: #{tpu_custom_call.1} parent=1 // pred_region
      %726 = dma.done [#allocation4], 16
    $region37: #{tpu_custom_call.1} parent=1 // pred_fallthru
      _
    %727 = vsyncpa [#allocation4], 1

// kernel: tpu_custom_call.1
$region0: #{tpu_custom_call.1}
  #allocation0 [shape = 'u32[]', space=smem, size = 0x4, offset = 0x4, fixed_abs, tag = 'smem constant byte address 0x4 - core index']
  #allocation1 [shape = 'u32[144,128]{1,0:T(1,128)}', space=vmem, size = 0x12000, scoped, tag = 'internal scratch']
  #allocation2 [shape = 'f32[1,1]{1,0:T(1,128)S(1)}', space=vmem, size = 0x200, scoped, tag = 'scoped memory for tpu_custom_call.1']
  %s0 = inlined_call_operand.vmem [shape: f32[8,128], index: 0, kind: input, shape index: {}]
  %s1 = inlined_call_operand.vmem [shape: f32[128,8], index: 1, kind: input, shape index: {}]
  %s2 = inlined_call_operand.vmem [shape: f32[128,1], index: 2, kind: input, shape index: {}]
  %s3 = inlined_call_operand.vmem [shape: f32[128,128], index: 3, kind: input, shape index: {}]
  %s4 = inlined_call_operand.vmem [shape: f32[128,1], index: 4, kind: input, shape index: {}]
  %s5 = inlined_call_operand.vmem [shape: f32[8,128], index: 5, kind: input, shape index: {}]
  %s6 = inlined_call_operand.<no memory space> [shape: f32[1,1], index: 6, kind: input, shape index: {}]
  %s7 = inlined_call_operand.hbm [shape: f32[1,128], index: 7, kind: output, shape index: {}]
  %s8 = sld [smem:[#allocation0]]
  $region38: #{tpu_custom_call.1} parent=0
    _
  %s10 = ssub.s32 1, %s8
  %s11 = scalar_select 0, %s10, %s8
  %v12 = vstv %s6
  %13 = vst [vmem:[#allocation2] sm:$0x1] %v12
  $region1: #{tpu_custom_call.1} parent=0
    #allocation3 [shape = 'u8[512]{0}', space=vmem, size = 0x400, scoped, tag = 'output window, operand 0, single buffered']
    #allocation4 [shape = 's32[1]{0}', space=sflag, size = 0x4, scoped, tag = 'scoped memory for tpu_custom_call.1']
    %14 = vsyncpa [#allocation4], 0
    // Predicated region
    $region2: #{tpu_custom_call.1} parent=1 // pred_check
      _
    $region3: #{tpu_custom_call.1} parent=1 // pred_check_branch
      %16 = sbr.rel (0) target = $region5
    $region4: #{tpu_custom_call.1} parent=1 // pred_region
      _
    $region5: #{tpu_custom_call.1} parent=1 // pred_fallthru
      _
    // Predicated region
    $region6: #{tpu_custom_call.1} parent=1 // pred_check
      _
    $region7: #{tpu_custom_call.1} parent=1 // pred_check_branch
      %18 = sbr.rel (0) target = $region9
    $region8: #{tpu_custom_call.1} parent=1 // pred_region
      _
    $region9: #{tpu_custom_call.1} parent=1 // pred_fallthru
      _
    // Predicated region
    $region10: #{tpu_custom_call.1} parent=1 // pred_check
      _
    $region11: #{tpu_custom_call.1} parent=1 // pred_check_branch
      %20 = sbr.rel (0) target = $region13
    $region12: #{tpu_custom_call.1} parent=1 // pred_region
      _
    $region13: #{tpu_custom_call.1} parent=1 // pred_fallthru
      _
    // Predicated region
    $region14: #{tpu_custom_call.1} parent=1 // pred_check
      _
    $region15: #{tpu_custom_call.1} parent=1 // pred_check_branch
      %22 = sbr.rel (0) target = $region17
    $region16: #{tpu_custom_call.1} parent=1 // pred_region
      _
    $region17: #{tpu_custom_call.1} parent=1 // pred_fallthru
      _
    // Predicated region
    $region18: #{tpu_custom_call.1} parent=1 // pred_check
      _
    $region19: #{tpu_custom_call.1} parent=1 // pred_check_branch
      %24 = sbr.rel (0) target = $region21
    $region20: #{tpu_custom_call.1} parent=1 // pred_region
      _
    $region21: #{tpu_custom_call.1} parent=1 // pred_fallthru
      _
    // Predicated region
    $region22: #{tpu_custom_call.1} parent=1 // pred_check
      _
    $region23: #{tpu_custom_call.1} parent=1 // pred_check_branch
      %26 = sbr.rel (0) target = $region25
    $region24: #{tpu_custom_call.1} parent=1 // pred_region
      _
    $region25: #{tpu_custom_call.1} parent=1 // pred_fallthru
      _
    // Predicated region
    $region26: #{tpu_custom_call.1} parent=1 // pred_check
      _
    $region27: #{tpu_custom_call.1} parent=1 // pred_check_branch
      %28 = sbr.rel (0) target = $region29
    $region28: #{tpu_custom_call.1} parent=1 // pred_region
      _
    $region29: #{tpu_custom_call.1} parent=1 // pred_fallthru
      _
    %v29 = vld [vmem:[%s0] sm:$0xff]
    %v30 = vld [vmem:[%s1] sm:$0xff]
    %v31 = vld [vmem:[%s1 + $0x8] sm:$0xff]
    %v32 = vld [vmem:[%s1 + $0x10] sm:$0xff]
    %v33 = vld [vmem:[%s1 + $0x18] sm:$0xff]
    %v34 = vld [vmem:[%s1 + $0x20] sm:$0xff]
    %v35 = vld [vmem:[%s1 + $0x28] sm:$0xff]
    %v36 = vld [vmem:[%s1 + $0x30] sm:$0xff]
    %v37 = vld [vmem:[%s1 + $0x38] sm:$0xff]
    %v38 = vld [vmem:[%s1 + $0x40] sm:$0xff]
    %v39 = vld [vmem:[%s1 + $0x48] sm:$0xff]
    %v40 = vld [vmem:[%s1 + $0x50] sm:$0xff]
    %v41 = vld [vmem:[%s1 + $0x58] sm:$0xff]
    %v42 = vld [vmem:[%s1 + $0x60] sm:$0xff]
    %v43 = vld [vmem:[%s1 + $0x68] sm:$0xff]
    %v44 = vld [vmem:[%s1 + $0x70] sm:$0xff]
    %v45 = vld [vmem:[%s1 + $0x78] sm:$0xff]
    %v46 = vld [vmem:[%s2] sm:$0xff]
    %v47 = vld [vmem:[%s2 + $0x8] sm:$0xff]
    %v48 = vld [vmem:[%s2 + $0x10] sm:$0xff]
    %v49 = vld [vmem:[%s2 + $0x18] sm:$0xff]
    %v50 = vld [vmem:[%s2 + $0x20] sm:$0xff]
    %v51 = vld [vmem:[%s2 + $0x28] sm:$0xff]
    %v52 = vld [vmem:[%s2 + $0x30] sm:$0xff]
    %v53 = vld [vmem:[%s2 + $0x38] sm:$0xff]
    %v54 = vld [vmem:[%s2 + $0x40] sm:$0xff]
    %v55 = vld [vmem:[%s2 + $0x48] sm:$0xff]
    %v56 = vld [vmem:[%s2 + $0x50] sm:$0xff]
    %v57 = vld [vmem:[%s2 + $0x58] sm:$0xff]
    %v58 = vld [vmem:[%s2 + $0x60] sm:$0xff]
    %v59 = vld [vmem:[%s2 + $0x68] sm:$0xff]
    %v60 = vld [vmem:[%s2 + $0x70] sm:$0xff]
    %v61 = vld [vmem:[%s2 + $0x78] sm:$0xff]
    %63 = vset.pattern.permute.xlu0 0
    %64 = vperm.xlu0 %63, %v46
    %v65 = vpop.permute.xlu0 %64
    %68 = vset.pattern.permute.xlu0 0
    %69 = vperm.xlu0 %68, %v47
    %v70 = vpop.permute.xlu0 %69
    %73 = vset.pattern.permute.xlu0 0
    %74 = vperm.xlu0 %73, %v48
    %v75 = vpop.permute.xlu0 %74
    %78 = vset.pattern.permute.xlu0 0
    %79 = vperm.xlu0 %78, %v49
    %v80 = vpop.permute.xlu0 %79
    %83 = vset.pattern.permute.xlu0 0
    %84 = vperm.xlu0 %83, %v50
    %v85 = vpop.permute.xlu0 %84
    %88 = vset.pattern.permute.xlu0 0
    %89 = vperm.xlu0 %88, %v51
    %v90 = vpop.permute.xlu0 %89
    %93 = vset.pattern.permute.xlu0 0
    %94 = vperm.xlu0 %93, %v52
    %v95 = vpop.permute.xlu0 %94
    %98 = vset.pattern.permute.xlu0 0
    %99 = vperm.xlu0 %98, %v53
    %v100 = vpop.permute.xlu0 %99
    %103 = vset.pattern.permute.xlu0 0
    %104 = vperm.xlu0 %103, %v54
    %v105 = vpop.permute.xlu0 %104
    %108 = vset.pattern.permute.xlu0 0
    %109 = vperm.xlu0 %108, %v55
    %v110 = vpop.permute.xlu0 %109
    %113 = vset.pattern.permute.xlu0 0
    %114 = vperm.xlu0 %113, %v56
    %v115 = vpop.permute.xlu0 %114
    %118 = vset.pattern.permute.xlu0 0
    %119 = vperm.xlu0 %118, %v57
    %v120 = vpop.permute.xlu0 %119
    %123 = vset.pattern.permute.xlu0 0
    %124 = vperm.xlu0 %123, %v58
    %v125 = vpop.permute.xlu0 %124
    %128 = vset.pattern.permute.xlu0 0
    %129 = vperm.xlu0 %128, %v59
    %v130 = vpop.permute.xlu0 %129
    %133 = vset.pattern.permute.xlu0 0
    %134 = vperm.xlu0 %133, %v60
    %v135 = vpop.permute.xlu0 %134
    %138 = vset.pattern.permute.xlu0 0
    %139 = vperm.xlu0 %138, %v61
    %v140 = vpop.permute.xlu0 %139
    %vm142 = vcmask 64512
    %v144 = vsel %vm142, %v30, 0
    %v147 = vsel %vm142, %v31, 0
    %v150 = vsel %vm142, %v32, 0
    %v153 = vsel %vm142, %v33, 0
    %v156 = vsel %vm142, %v34, 0
    %v159 = vsel %vm142, %v35, 0
    %v162 = vsel %vm142, %v36, 0
    %v165 = vsel %vm142, %v37, 0
    %v168 = vsel %vm142, %v38, 0
    %v171 = vsel %vm142, %v39, 0
    %v174 = vsel %vm142, %v40, 0
    %v177 = vsel %vm142, %v41, 0
    %v180 = vsel %vm142, %v42, 0
    %v183 = vsel %vm142, %v43, 0
    %v186 = vsel %vm142, %v44, 0
    %v189 = vsel %vm142, %v45, 0
    %191 = vmatprep.subr.mxu0 0.0
    %192 = vmatpush1.msra.mxu0 %v29
    %193 = vmatprep.subr.mxu0 0.0
    %194 = vmatpush1.msra.mxu0 0.0
    %195 = vmatprep.subr.mxu0 0.0
    %196 = vmatpush1.msra.mxu0 0.0
    %197 = vmatprep.subr.mxu0 0.0
    %198 = vmatpush1.msra.mxu0 0.0
    %199 = vmatprep.subr.mxu0 0.0
    %200 = vmatpush1.msra.mxu0 0.0
    %201 = vmatprep.subr.mxu0 0.0
    %202 = vmatpush1.msra.mxu0 0.0
    %203 = vmatprep.subr.mxu0 0.0
    %204 = vmatpush1.msra.mxu0 0.0
    %205 = vmatprep.subr.mxu0 0.0
    %206 = vmatpush1.msra.mxu0 0.0
    %207 = vmatprep.subr.mxu0 0.0
    %208 = vmatpush1.msra.mxu0 0.0
    %209 = vmatprep.subr.mxu0 0.0
    %210 = vmatpush1.msra.mxu0 0.0
    %211 = vmatprep.subr.mxu0 0.0
    %212 = vmatpush1.msra.mxu0 0.0
    %213 = vmatprep.subr.mxu0 0.0
    %214 = vmatpush1.msra.mxu0 0.0
    %215 = vmatprep.subr.mxu0 0.0
    %216 = vmatpush1.msra.mxu0 0.0
    %217 = vmatprep.subr.mxu0 0.0
    %218 = vmatpush1.msra.mxu0 0.0
    %219 = vmatprep.subr.mxu0 0.0
    %220 = vmatpush1.msra.mxu0 0.0
    %221 = vmatprep.subr.mxu0 0.0
    %222 = vmatpush1.msra.mxu0 0.0
    %223 = vmatprep.subr.mxu0 0.0
    %224 = vmatpush1.msra.mxu0 0.0
    %225 = vmatprep.subr.mxu0 0.0
    %226 = vmatpush1.msra.mxu0 0.0
    %227 = vmatprep.subr.mxu0 0.0
    %228 = vmatpush1.msra.mxu0 0.0
    %229 = vmatprep.subr.mxu0 0.0
    %230 = vmatpush1.msra.mxu0 0.0
    %231 = vmatprep.subr.mxu0 0.0
    %232 = vmatpush1.msra.mxu0 0.0
    %233 = vmatprep.subr.mxu0 0.0
    %234 = vmatpush1.msra.mxu0 0.0
    %235 = vmatprep.subr.mxu0 0.0
    %236 = vmatpush1.msra.mxu0 0.0
    %237 = vmatprep.subr.mxu0 0.0
    %238 = vmatpush1.msra.mxu0 0.0
    %239 = vmatprep.subr.mxu0 0.0
    %240 = vmatpush1.msra.mxu0 0.0
    %241 = vmatprep.subr.mxu0 0.0
    %242 = vmatpush1.msra.mxu0 0.0
    %243 = vmatprep.subr.mxu0 0.0
    %244 = vmatpush1.msra.mxu0 0.0
    %245 = vmatprep.subr.mxu0 0.0
    %246 = vmatpush1.msra.mxu0 0.0
    %247 = vmatprep.subr.mxu0 0.0
    %248 = vmatpush1.msra.mxu0 0.0
    %249 = vmatprep.subr.mxu0 0.0
    %250 = vmatpush1.msra.mxu0 0.0
    %251 = vmatprep.subr.mxu0 0.0
    %252 = vmatpush1.msra.mxu0 0.0
    %253 = vmatprep.subr.mxu0 0.0
    %254 = vmatpush1.msra.mxu0 0.0
    %255 = vmatprep.mubr.f32.mxu0 0.0
    %256 = vmatmul.mubr.f32.gmra.mrb[0].mxu0 %v144
    %v257 = vpop.f32.mrb[0].mxu0
    %v258 = vadd.f32 %v65, %v257
    %v259 = vpop.f32.mrb[0].mxu0
    %260 = vmatprep.mubr.f32.mxu0 0.0
    %261 = vmatmul.mubr.f32.gmra.mrb[0].mxu0 %v147
    %v262 = vpop.f32.mrb[0].mxu0
    %v263 = vadd.f32 %v70, %v262
    %v264 = vpop.f32.mrb[0].mxu0
    %265 = vmatprep.mubr.f32.mxu0 0.0
    %266 = vmatmul.mubr.f32.gmra.mrb[0].mxu0 %v150
    %v267 = vpop.f32.mrb[0].mxu0
    %v268 = vadd.f32 %v75, %v267
    %v269 = vpop.f32.mrb[0].mxu0
    %270 = vmatprep.mubr.f32.mxu0 0.0
    %271 = vmatmul.mubr.f32.gmra.mrb[0].mxu0 %v153
    %v272 = vpop.f32.mrb[0].mxu0
    %v273 = vadd.f32 %v80, %v272
    %v274 = vpop.f32.mrb[0].mxu0
    %275 = vmatprep.mubr.f32.mxu0 0.0
    %276 = vmatmul.mubr.f32.gmra.mrb[0].mxu0 %v156
    %v277 = vpop.f32.mrb[0].mxu0
    %v278 = vadd.f32 %v85, %v277
    %v279 = vpop.f32.mrb[0].mxu0
    %280 = vmatprep.mubr.f32.mxu0 0.0
    %281 = vmatmul.mubr.f32.gmra.mrb[0].mxu0 %v159
    %v282 = vpop.f32.mrb[0].mxu0
    %v283 = vadd.f32 %v90, %v282
    %v284 = vpop.f32.mrb[0].mxu0
    %285 = vmatprep.mubr.f32.mxu0 0.0
    %286 = vmatmul.mubr.f32.gmra.mrb[0].mxu0 %v162
    %v287 = vpop.f32.mrb[0].mxu0
    %v288 = vadd.f32 %v95, %v287
    %v289 = vpop.f32.mrb[0].mxu0
    %290 = vmatprep.mubr.f32.mxu0 0.0
    %291 = vmatmul.mubr.f32.gmra.mrb[0].mxu0 %v165
    %v292 = vpop.f32.mrb[0].mxu0
    %v293 = vadd.f32 %v100, %v292
    %v294 = vpop.f32.mrb[0].mxu0
    %295 = vmatprep.mubr.f32.mxu0 0.0
    %296 = vmatmul.mubr.f32.gmra.mrb[0].mxu0 %v168
    %v297 = vpop.f32.mrb[0].mxu0
    %v298 = vadd.f32 %v105, %v297
    %v299 = vpop.f32.mrb[0].mxu0
    %300 = vmatprep.mubr.f32.mxu0 0.0
    %301 = vmatmul.mubr.f32.gmra.mrb[0].mxu0 %v171
    %v302 = vpop.f32.mrb[0].mxu0
    %v303 = vadd.f32 %v110, %v302
    %v304 = vpop.f32.mrb[0].mxu0
    %305 = vmatprep.mubr.f32.mxu0 0.0
    %306 = vmatmul.mubr.f32.gmra.mrb[0].mxu0 %v174
    %v307 = vpop.f32.mrb[0].mxu0
    %v308 = vadd.f32 %v115, %v307
    %v309 = vpop.f32.mrb[0].mxu0
    %310 = vmatprep.mubr.f32.mxu0 0.0
    %311 = vmatmul.mubr.f32.gmra.mrb[0].mxu0 %v177
    %v312 = vpop.f32.mrb[0].mxu0
    %v313 = vadd.f32 %v120, %v312
    %v314 = vpop.f32.mrb[0].mxu0
    %315 = vmatprep.mubr.f32.mxu0 0.0
    %316 = vmatmul.mubr.f32.gmra.mrb[0].mxu0 %v180
    %v317 = vpop.f32.mrb[0].mxu0
    %v318 = vadd.f32 %v125, %v317
    %v319 = vpop.f32.mrb[0].mxu0
    %320 = vmatprep.mubr.f32.mxu0 0.0
    %321 = vmatmul.mubr.f32.gmra.mrb[0].mxu0 %v183
    %v322 = vpop.f32.mrb[0].mxu0
    %v323 = vadd.f32 %v130, %v322
    %v324 = vpop.f32.mrb[0].mxu0
    %325 = vmatprep.mubr.f32.mxu0 0.0
    %326 = vmatmul.mubr.f32.gmra.mrb[0].mxu0 %v186
    %v327 = vpop.f32.mrb[0].mxu0
    %v328 = vadd.f32 %v135, %v327
    %v329 = vpop.f32.mrb[0].mxu0
    %330 = vmatprep.mubr.f32.mxu0 0.0
    %331 = vmatmul.mubr.f32.gmra.mrb[0].mxu0 %v189
    %v332 = vpop.f32.mrb[0].mxu0
    %v333 = vadd.f32 %v140, %v332
    %v334 = vpop.f32.mrb[0].mxu0
    %335 = vdwg.mxu0
    %v336 = vmax.f32 %v258, 0.0
    %v337 = vmax.f32 %v263, 0.0
    %v338 = vmax.f32 %v268, 0.0
    %v339 = vmax.f32 %v273, 0.0
    %v340 = vmax.f32 %v278, 0.0
    %v341 = vmax.f32 %v283, 0.0
    %v342 = vmax.f32 %v288, 0.0
    %v343 = vmax.f32 %v293, 0.0
    %v344 = vmax.f32 %v298, 0.0
    %v345 = vmax.f32 %v303, 0.0
    %v346 = vmax.f32 %v308, 0.0
    %v347 = vmax.f32 %v313, 0.0
    %v348 = vmax.f32 %v318, 0.0
    %v349 = vmax.f32 %v323, 0.0
    %v350 = vmax.f32 %v328, 0.0
    %v351 = vmax.f32 %v333, 0.0
    %v352 = vld [vmem:[%s3] sm:$0xff]
    %v353 = vld [vmem:[%s3 + $0x8] sm:$0xff]
    %v354 = vld [vmem:[%s3 + $0x10] sm:$0xff]
    %v355 = vld [vmem:[%s3 + $0x18] sm:$0xff]
    %v356 = vld [vmem:[%s3 + $0x20] sm:$0xff]
    %v357 = vld [vmem:[%s3 + $0x28] sm:$0xff]
    %v358 = vld [vmem:[%s3 + $0x30] sm:$0xff]
    %v359 = vld [vmem:[%s3 + $0x38] sm:$0xff]
    %v360 = vld [vmem:[%s3 + $0x40] sm:$0xff]
    %v361 = vld [vmem:[%s3 + $0x48] sm:$0xff]
    %v362 = vld [vmem:[%s3 + $0x50] sm:$0xff]
    %v363 = vld [vmem:[%s3 + $0x58] sm:$0xff]
    %v364 = vld [vmem:[%s3 + $0x60] sm:$0xff]
    %v365 = vld [vmem:[%s3 + $0x68] sm:$0xff]
    %v366 = vld [vmem:[%s3 + $0x70] sm:$0xff]
    %v367 = vld [vmem:[%s3 + $0x78] sm:$0xff]
    %v368 = vld [vmem:[%s4] sm:$0xff]
    %v369 = vld [vmem:[%s4 + $0x8] sm:$0xff]
    %v370 = vld [vmem:[%s4 + $0x10] sm:$0xff]
    %v371 = vld [vmem:[%s4 + $0x18] sm:$0xff]
    %v372 = vld [vmem:[%s4 + $0x20] sm:$0xff]
    %v373 = vld [vmem:[%s4 + $0x28] sm:$0xff]
    %v374 = vld [vmem:[%s4 + $0x30] sm:$0xff]
    %v375 = vld [vmem:[%s4 + $0x38] sm:$0xff]
    %v376 = vld [vmem:[%s4 + $0x40] sm:$0xff]
    %v377 = vld [vmem:[%s4 + $0x48] sm:$0xff]
    %v378 = vld [vmem:[%s4 + $0x50] sm:$0xff]
    %v379 = vld [vmem:[%s4 + $0x58] sm:$0xff]
    %v380 = vld [vmem:[%s4 + $0x60] sm:$0xff]
    %v381 = vld [vmem:[%s4 + $0x68] sm:$0xff]
    %v382 = vld [vmem:[%s4 + $0x70] sm:$0xff]
    %v383 = vld [vmem:[%s4 + $0x78] sm:$0xff]
    %385 = vset.pattern.permute.xlu0 0
    %386 = vperm.xlu0 %385, %v368
    %v387 = vpop.permute.xlu0 %386
    %390 = vset.pattern.permute.xlu0 0
    %391 = vperm.xlu0 %390, %v369
    %v392 = vpop.permute.xlu0 %391
    %395 = vset.pattern.permute.xlu0 0
    %396 = vperm.xlu0 %395, %v370
    %v397 = vpop.permute.xlu0 %396
    %400 = vset.pattern.permute.xlu0 0
    %401 = vperm.xlu0 %400, %v371
    %v402 = vpop.permute.xlu0 %401
    %405 = vset.pattern.permute.xlu0 0
    %406 = vperm.xlu0 %405, %v372
    %v407 = vpop.permute.xlu0 %406
    %410 = vset.pattern.permute.xlu0 0
    %411 = vperm.xlu0 %410, %v373
    %v412 = vpop.permute.xlu0 %411
    %415 = vset.pattern.permute.xlu0 0
    %416 = vperm.xlu0 %415, %v374
    %v417 = vpop.permute.xlu0 %416
    %420 = vset.pattern.permute.xlu0 0
    %421 = vperm.xlu0 %420, %v375
    %v422 = vpop.permute.xlu0 %421
    %425 = vset.pattern.permute.xlu0 0
    %426 = vperm.xlu0 %425, %v376
    %v427 = vpop.permute.xlu0 %426
    %430 = vset.pattern.permute.xlu0 0
    %431 = vperm.xlu0 %430, %v377
    %v432 = vpop.permute.xlu0 %431
    %435 = vset.pattern.permute.xlu0 0
    %436 = vperm.xlu0 %435, %v378
    %v437 = vpop.permute.xlu0 %436
    %440 = vset.pattern.permute.xlu0 0
    %441 = vperm.xlu0 %440, %v379
    %v442 = vpop.permute.xlu0 %441
    %445 = vset.pattern.permute.xlu0 0
    %446 = vperm.xlu0 %445, %v380
    %v447 = vpop.permute.xlu0 %446
    %450 = vset.pattern.permute.xlu0 0
    %451 = vperm.xlu0 %450, %v381
    %v452 = vpop.permute.xlu0 %451
    %455 = vset.pattern.permute.xlu0 0
    %456 = vperm.xlu0 %455, %v382
    %v457 = vpop.permute.xlu0 %456
    %460 = vset.pattern.permute.xlu0 0
    %461 = vperm.xlu0 %460, %v383
    %v462 = vpop.permute.xlu0 %461
    %464 = vmatprep.subr.mxu0 0.0
    %465 = vmatpush1.msra.mxu0 %v336
    %466 = vmatprep.subr.mxu0 0.0
    %467 = vmatpush1.msra.mxu0 %v337
    %468 = vmatprep.subr.mxu0 0.0
    %469 = vmatpush1.msra.mxu0 %v338
    %470 = vmatprep.subr.mxu0 0.0
    %471 = vmatpush1.msra.mxu0 %v339
    %472 = vmatprep.subr.mxu0 0.0
    %473 = vmatpush1.msra.mxu0 %v340
    %474 = vmatprep.subr.mxu0 0.0
    %475 = vmatpush1.msra.mxu0 %v341
    %476 = vmatprep.subr.mxu0 0.0
    %477 = vmatpush1.msra.mxu0 %v342
    %478 = vmatprep.subr.mxu0 0.0
    %479 = vmatpush1.msra.mxu0 %v343
    %480 = vmatprep.subr.mxu0 0.0
    %481 = vmatpush1.msra.mxu0 %v344
    %482 = vmatprep.subr.mxu0 0.0
    %483 = vmatpush1.msra.mxu0 %v345
    %484 = vmatprep.subr.mxu0 0.0
    %485 = vmatpush1.msra.mxu0 %v346
    %486 = vmatprep.subr.mxu0 0.0
    %487 = vmatpush1.msra.mxu0 %v347
    %488 = vmatprep.subr.mxu0 0.0
    %489 = vmatpush1.msra.mxu0 %v348
    %490 = vmatprep.subr.mxu0 0.0
    %491 = vmatpush1.msra.mxu0 %v349
    %492 = vmatprep.subr.mxu0 0.0
    %493 = vmatpush1.msra.mxu0 %v350
    %494 = vmatprep.subr.mxu0 0.0
    %495 = vmatpush1.msra.mxu0 %v351
    %496 = vmatprep.subr.mxu0 0.0
    %497 = vmatpush1.msra.mxu0 0.0
    %498 = vmatprep.subr.mxu0 0.0
    %499 = vmatpush1.msra.mxu0 0.0
    %500 = vmatprep.subr.mxu0 0.0
    %501 = vmatpush1.msra.mxu0 0.0
    %502 = vmatprep.subr.mxu0 0.0
    %503 = vmatpush1.msra.mxu0 0.0
    %504 = vmatprep.subr.mxu0 0.0
    %505 = vmatpush1.msra.mxu0 0.0
    %506 = vmatprep.subr.mxu0 0.0
    %507 = vmatpush1.msra.mxu0 0.0
    %508 = vmatprep.subr.mxu0 0.0
    %509 = vmatpush1.msra.mxu0 0.0
    %510 = vmatprep.subr.mxu0 0.0
    %511 = vmatpush1.msra.mxu0 0.0
    %512 = vmatprep.subr.mxu0 0.0
    %513 = vmatpush1.msra.mxu0 0.0
    %514 = vmatprep.subr.mxu0 0.0
    %515 = vmatpush1.msra.mxu0 0.0
    %516 = vmatprep.subr.mxu0 0.0
    %517 = vmatpush1.msra.mxu0 0.0
    %518 = vmatprep.subr.mxu0 0.0
    %519 = vmatpush1.msra.mxu0 0.0
    %520 = vmatprep.subr.mxu0 0.0
    %521 = vmatpush1.msra.mxu0 0.0
    %522 = vmatprep.subr.mxu0 0.0
    %523 = vmatpush1.msra.mxu0 0.0
    %524 = vmatprep.subr.mxu0 0.0
    %525 = vmatpush1.msra.mxu0 0.0
    %526 = vmatprep.subr.mxu0 0.0
    %527 = vmatpush1.msra.mxu0 0.0
    %528 = vmatprep.mubr.f32.mxu0 0.0
    %529 = vmatmul.mubr.f32.gmra.mrb[0].mxu0 %v352
    %v530 = vpop.f32.mrb[0].mxu0
    %v531 = vadd.f32 %v387, %v530
    %v532 = vpop.f32.mrb[0].mxu0
    %533 = vmatprep.mubr.f32.mxu0 0.0
    %534 = vmatmul.mubr.f32.gmra.mrb[0].mxu0 %v353
    %v535 = vpop.f32.mrb[0].mxu0
    %v536 = vadd.f32 %v392, %v535
    %v537 = vpop.f32.mrb[0].mxu0
    %538 = vmatprep.mubr.f32.mxu0 0.0
    %539 = vmatmul.mubr.f32.gmra.mrb[0].mxu0 %v354
    %v540 = vpop.f32.mrb[0].mxu0
    %v541 = vadd.f32 %v397, %v540
    %v542 = vpop.f32.mrb[0].mxu0
    %543 = vmatprep.mubr.f32.mxu0 0.0
    %544 = vmatmul.mubr.f32.gmra.mrb[0].mxu0 %v355
    %v545 = vpop.f32.mrb[0].mxu0
    %v546 = vadd.f32 %v402, %v545
    %v547 = vpop.f32.mrb[0].mxu0
    %548 = vmatprep.mubr.f32.mxu0 0.0
    %549 = vmatmul.mubr.f32.gmra.mrb[0].mxu0 %v356
    %v550 = vpop.f32.mrb[0].mxu0
    %v551 = vadd.f32 %v407, %v550
    %v552 = vpop.f32.mrb[0].mxu0
    %553 = vmatprep.mubr.f32.mxu0 0.0
    %554 = vmatmul.mubr.f32.gmra.mrb[0].mxu0 %v357
    %v555 = vpop.f32.mrb[0].mxu0
    %v556 = vadd.f32 %v412, %v555
    %v557 = vpop.f32.mrb[0].mxu0
    %558 = vmatprep.mubr.f32.mxu0 0.0
    %559 = vmatmul.mubr.f32.gmra.mrb[0].mxu0 %v358
    %v560 = vpop.f32.mrb[0].mxu0
    %v561 = vadd.f32 %v417, %v560
    %v562 = vpop.f32.mrb[0].mxu0
    %563 = vmatprep.mubr.f32.mxu0 0.0
    %564 = vmatmul.mubr.f32.gmra.mrb[0].mxu0 %v359
    %v565 = vpop.f32.mrb[0].mxu0
    %v566 = vadd.f32 %v422, %v565
    %v567 = vpop.f32.mrb[0].mxu0
    %568 = vmatprep.mubr.f32.mxu0 0.0
    %569 = vmatmul.mubr.f32.gmra.mrb[0].mxu0 %v360
    %v570 = vpop.f32.mrb[0].mxu0
    %v571 = vadd.f32 %v427, %v570
    %v572 = vpop.f32.mrb[0].mxu0
    %573 = vmatprep.mubr.f32.mxu0 0.0
    %574 = vmatmul.mubr.f32.gmra.mrb[0].mxu0 %v361
    %v575 = vpop.f32.mrb[0].mxu0
    %v576 = vadd.f32 %v432, %v575
    %v577 = vpop.f32.mrb[0].mxu0
    %578 = vmatprep.mubr.f32.mxu0 0.0
    %579 = vmatmul.mubr.f32.gmra.mrb[0].mxu0 %v362
    %v580 = vpop.f32.mrb[0].mxu0
    %v581 = vadd.f32 %v437, %v580
    %v582 = vpop.f32.mrb[0].mxu0
    %583 = vmatprep.mubr.f32.mxu0 0.0
    %584 = vmatmul.mubr.f32.gmra.mrb[0].mxu0 %v363
    %v585 = vpop.f32.mrb[0].mxu0
    %v586 = vadd.f32 %v442, %v585
    %v587 = vpop.f32.mrb[0].mxu0
    %588 = vmatprep.mubr.f32.mxu0 0.0
    %589 = vmatmul.mubr.f32.gmra.mrb[0].mxu0 %v364
    %v590 = vpop.f32.mrb[0].mxu0
    %v591 = vadd.f32 %v447, %v590
    %v592 = vpop.f32.mrb[0].mxu0
    %593 = vmatprep.mubr.f32.mxu0 0.0
    %594 = vmatmul.mubr.f32.gmra.mrb[0].mxu0 %v365
    %v595 = vpop.f32.mrb[0].mxu0
    %v596 = vadd.f32 %v452, %v595
    %v597 = vpop.f32.mrb[0].mxu0
    %598 = vmatprep.mubr.f32.mxu0 0.0
    %599 = vmatmul.mubr.f32.gmra.mrb[0].mxu0 %v366
    %v600 = vpop.f32.mrb[0].mxu0
    %v601 = vadd.f32 %v457, %v600
    %v602 = vpop.f32.mrb[0].mxu0
    %603 = vmatprep.mubr.f32.mxu0 0.0
    %604 = vmatmul.mubr.f32.gmra.mrb[0].mxu0 %v367
    %v605 = vpop.f32.mrb[0].mxu0
    %v606 = vadd.f32 %v462, %v605
    %v607 = vpop.f32.mrb[0].mxu0
    %608 = vdwg.mxu0
    %v609 = vmax.f32 %v531, 0.0
    %v610 = vmax.f32 %v536, 0.0
    %v611 = vmax.f32 %v541, 0.0
    %v612 = vmax.f32 %v546, 0.0
    %v613 = vmax.f32 %v551, 0.0
    %v614 = vmax.f32 %v556, 0.0
    %v615 = vmax.f32 %v561, 0.0
    %v616 = vmax.f32 %v566, 0.0
    %v617 = vmax.f32 %v571, 0.0
    %v618 = vmax.f32 %v576, 0.0
    %v619 = vmax.f32 %v581, 0.0
    %v620 = vmax.f32 %v586, 0.0
    %v621 = vmax.f32 %v591, 0.0
    %v622 = vmax.f32 %v596, 0.0
    %v623 = vmax.f32 %v601, 0.0
    %v624 = vmax.f32 %v606, 0.0
    %v625 = vld [vmem:[%s5] sm:$0xff]
    %626 = vmatprep.subr.mxu0 0.0
    %627 = vmatpush1.msra.mxu0 %v609
    %628 = vmatprep.subr.mxu0 0.0
    %629 = vmatpush1.msra.mxu0 %v610
    %630 = vmatprep.subr.mxu0 0.0
    %631 = vmatpush1.msra.mxu0 %v611
    %632 = vmatprep.subr.mxu0 0.0
    %633 = vmatpush1.msra.mxu0 %v612
    %634 = vmatprep.subr.mxu0 0.0
    %635 = vmatpush1.msra.mxu0 %v613
    %636 = vmatprep.subr.mxu0 0.0
    %637 = vmatpush1.msra.mxu0 %v614
    %638 = vmatprep.subr.mxu0 0.0
    %639 = vmatpush1.msra.mxu0 %v615
    %640 = vmatprep.subr.mxu0 0.0
    %641 = vmatpush1.msra.mxu0 %v616
    %642 = vmatprep.subr.mxu0 0.0
    %643 = vmatpush1.msra.mxu0 %v617
    %644 = vmatprep.subr.mxu0 0.0
    %645 = vmatpush1.msra.mxu0 %v618
    %646 = vmatprep.subr.mxu0 0.0
    %647 = vmatpush1.msra.mxu0 %v619
    %648 = vmatprep.subr.mxu0 0.0
    %649 = vmatpush1.msra.mxu0 %v620
    %650 = vmatprep.subr.mxu0 0.0
    %651 = vmatpush1.msra.mxu0 %v621
    %652 = vmatprep.subr.mxu0 0.0
    %653 = vmatpush1.msra.mxu0 %v622
    %654 = vmatprep.subr.mxu0 0.0
    %655 = vmatpush1.msra.mxu0 %v623
    %656 = vmatprep.subr.mxu0 0.0
    %657 = vmatpush1.msra.mxu0 %v624
    %658 = vmatprep.subr.mxu0 0.0
    %659 = vmatpush1.msra.mxu0 0.0
    %660 = vmatprep.subr.mxu0 0.0
    %661 = vmatpush1.msra.mxu0 0.0
    %662 = vmatprep.subr.mxu0 0.0
    %663 = vmatpush1.msra.mxu0 0.0
    %664 = vmatprep.subr.mxu0 0.0
    %665 = vmatpush1.msra.mxu0 0.0
    %666 = vmatprep.subr.mxu0 0.0
    %667 = vmatpush1.msra.mxu0 0.0
    %668 = vmatprep.subr.mxu0 0.0
    %669 = vmatpush1.msra.mxu0 0.0
    %670 = vmatprep.subr.mxu0 0.0
    %671 = vmatpush1.msra.mxu0 0.0
    %672 = vmatprep.subr.mxu0 0.0
    %673 = vmatpush1.msra.mxu0 0.0
    %674 = vmatprep.subr.mxu0 0.0
    %675 = vmatpush1.msra.mxu0 0.0
    %676 = vmatprep.subr.mxu0 0.0
    %677 = vmatpush1.msra.mxu0 0.0
    %678 = vmatprep.subr.mxu0 0.0
    %679 = vmatpush1.msra.mxu0 0.0
    %680 = vmatprep.subr.mxu0 0.0
    %681 = vmatpush1.msra.mxu0 0.0
    %682 = vmatprep.subr.mxu0 0.0
    %683 = vmatpush1.msra.mxu0 0.0
    %684 = vmatprep.subr.mxu0 0.0
    %685 = vmatpush1.msra.mxu0 0.0
    %686 = vmatprep.subr.mxu0 0.0
    %687 = vmatpush1.msra.mxu0 0.0
    %688 = vmatprep.subr.mxu0 0.0
    %689 = vmatpush1.msra.mxu0 0.0
    %690 = vmatprep.mubr.f32.mxu0 0.0
    %691 = vmatmul.mubr.f32.gmra.mrb[0].mxu0 %v625
    %v692 = vpop.f32.mrb[0].mxu0
    %v693 = vadd.f32 0.0, %v692
    %v694 = vpop.f32.mrb[0].mxu0
    %695 = vdwg.mxu0
    %v696 = vld [vmem:[#allocation2] sm:$0x1]
    %698 = vset.pattern.permute.xlu0 0
    %699 = vperm.xlu0 %698, %v696
    %v700 = vpop.permute.xlu0 %699
    %v702 = vlaneseq
    %v703 = vshrl.u32 %v702, 7
    %v704 = vsub.s32 0, %v703
    %v705 = vrot.slane %v700, %v704
    %v706 = vadd.f32 %v693, %v705
    %v707 = vxor.u32 %v706, 2147483648
    %v708 = vmul.f32 %v707, 1.442695
    %v709 = vpow.pop %v708
    %v710 = vadd.f32 %v709, 1.0
    %v711 = vrcp.pop %v710
    %v712 = vmul.f32 1.0, %v711
    %713 = vst [vmem:[#allocation3] sm:$0x1] %v712
    // Predicated region
    $region30: #{tpu_custom_call.1} parent=1 // pred_check
      _
    $region31: #{tpu_custom_call.1} parent=1 // pred_check_branch
      %715 = sbr.rel (0) target = $region33
    $region32: #{tpu_custom_call.1} parent=1 // pred_region
      %s717 = ssub.s32 16, 16
      %718 = vsyncadd [#allocation4], %s717
      %s720 = sshll.u32 [#allocation3], 4
      %s721 = int_to_ptr.vmem [resolvable:$true] %s720
      %723 = dma.vmem_to_hbm [thread:$0]  %s721, 16, %s7, [#allocation4]
    $region33: #{tpu_custom_call.1} parent=1 // pred_fallthru
      _
    // Predicated region
    $region34: #{tpu_custom_call.1} parent=1 // pred_check
      _
    $region35: #{tpu_custom_call.1} parent=1 // pred_check_branch
      %725 = sbr.rel (0) target = $region37
    $region36: #{tpu_custom_call.1} parent=1 // pred_region
      %726 = dma.done [#allocation4], 16
    $region37: #{tpu_custom_call.1} parent=1 // pred_fallthru
      _
    %727 = vsyncpa [#allocation4], 1

</llo_original>
